<compile_context>
chip_gen: v7x
topology: tpu7x:2x2x1
jax: 0.10.0
libtpu: 0.0.40
codegen_flags: <defaults>
</compile_context>

<pallas_src>
import functools

import jax
import jax.numpy as jnp
from jax import lax
from jax.experimental import pallas as pl
from jax.experimental.pallas import tpu as pltpu


_VMEM_LIMIT = 32 * 1024 * 1024  # safe on v5e/v6e/v7x (>= scoped defaults, << physical)


# ----------------------------------------------------------------------------- kernels

def _ln_linear_kernel(x_ref, g_ref, b_ref, w_ref, bias_ref, o_ref, *, eps, activation):
    """Fused LayerNorm (torch-style biased variance) + Linear (+ optional tanh-GELU)."""
    x = x_ref[...].astype(jnp.float32)                              # (TM, E)
    mean = jnp.mean(x, axis=-1, keepdims=True)
    var = jnp.mean((x - mean) ** 2, axis=-1, keepdims=True)
    xhat = (x - mean) * lax.rsqrt(var + eps)
    h = (xhat * g_ref[...] + b_ref[...]).astype(jnp.bfloat16)       # bf16 MXU operand
    y = jnp.dot(h, w_ref[...].astype(jnp.bfloat16),
                preferred_element_type=jnp.float32)                 # (TM, TN), f32 acc
    y = y + bias_ref[...].astype(jnp.float32)
    if activation == "gelu_tanh":
        # nn.GELU(approximate='tanh')
        c = 0.7978845608028654  # sqrt(2/pi)
        y = 0.5 * y * (1.0 + jnp.tanh(c * (y + 0.044715 * y * y * y)))
    o_ref[...] = y.astype(o_ref.dtype)


def _linear_residual_kernel(x_ref, w_ref, bias_ref, r_ref, o_ref, acc_ref):
    """Tiled matmul with K-reduction accumulator; bias + residual fused into the epilogue."""
    k = pl.program_id(2)

    @pl.when(k == 0)
    def _():
        acc_ref[...] = jnp.zeros_like(acc_ref)

    acc_ref[...] += jnp.dot(x_ref[...].astype(jnp.bfloat16),
                            w_ref[...].astype(jnp.bfloat16),
                            preferred_element_type=jnp.float32)

    @pl.when(k == pl.num_programs(2) - 1)
    def _():
        y = acc_ref[...] + bias_ref[...].astype(jnp.float32) + r_ref[...].astype(jnp.float32)
        o_ref[...] = y.astype(o_ref.dtype)


def _attn_kernel(qkv_ref, o_ref, *, n_head, head_size, n_embd, scale):
    """Causal multi-head attention for one batch element from the fused QKV slab.

    Slices per-head Q/K/V columns in-kernel (no host transposes) and writes the heads
    back concatenated, so the HBM store is a lane-dense (T, E) tile.
    """
    qkv = qkv_ref[0]                                                # (T, 3E)
    t = qkv.shape[0]
    row = lax.broadcasted_iota(jnp.int32, (t, t), 0)
    col = lax.broadcasted_iota(jnp.int32, (t, t), 1)
    causal = col <= row

    # TODO(synk): for long sequences convert to a flash-style KV-tiled online softmax;
    # the (T, T) score block here is O(T^2) VMEM.
    outs = []
    for h in range(n_head):
        q = qkv[:, h * head_size:(h + 1) * head_size].astype(jnp.bfloat16)
        k = qkv[:, n_embd + h * head_size:n_embd + (h + 1) * head_size].astype(jnp.bfloat16)
        v = qkv[:, 2 * n_embd + h * head_size:2 * n_embd + (h + 1) * head_size].astype(jnp.bfloat16)
        # contract on last axes directly (no in-kernel transpose of K)
        s = lax.dot_general(q, k, (((1,), (1,)), ((), ())),
                            preferred_element_type=jnp.float32) * scale    # (T, T) f32
        s = jnp.where(causal, s, -jnp.inf)
        m = jnp.max(s, axis=-1, keepdims=True)
        p = jnp.exp(s - m)
        p = p * pl.reciprocal(jnp.sum(p, axis=-1, keepdims=True), approx=True)
        outs.append(jnp.dot(p.astype(jnp.bfloat16), v,
                            preferred_element_type=jnp.float32))           # (T, hd)
    o_ref[0] = jnp.concatenate(outs, axis=-1).astype(o_ref.dtype)          # (T, E)


# ----------------------------------------------------------------------------- wrappers

def _pick_tile(dim, preferred, align):
    """Largest tile <= preferred that is a multiple of `align` and divides `dim`;
    falls back to the full dim (always legal for the last-two-dims rule)."""
    if dim <= preferred:
        return dim
    t = (preferred // align) * align
    while t >= align:
        if dim % t == 0:
            return t
        t -= align
    return dim


def ln_linear(x, gamma, beta, w, bias, activation=None, eps=1e-5):
    n, e = x.shape
    m = w.shape[1]
    tm = _pick_tile(n, 256, 8)
    tn = _pick_tile(m, 512, 128)
    return pl.pallas_call(
        functools.partial(_ln_linear_kernel, eps=eps, activation=activation),
        out_shape=jax.ShapeDtypeStruct((n, m), x.dtype),
        grid=(n // tm, m // tn),
        in_specs=[
            pl.BlockSpec((tm, e), lambda i, j: (i, 0)),
            pl.BlockSpec((1, e), lambda i, j: (0, 0)),
            pl.BlockSpec((1, e), lambda i, j: (0, 0)),
            pl.BlockSpec((e, tn), lambda i, j: (0, j)),
            pl.BlockSpec((1, tn), lambda i, j: (0, j)),
        ],
        out_specs=pl.BlockSpec((tm, tn), lambda i, j: (i, j)),
        compiler_params=pltpu.CompilerParams(
            dimension_semantics=("parallel", "parallel"),
            vmem_limit_bytes=_VMEM_LIMIT),
    )(x, gamma, beta, w, bias)


def linear_residual(x, w, bias, residual):
    n, kdim = x.shape
    m = w.shape[1]
    tm = _pick_tile(n, 256, 8)
    tn = _pick_tile(m, 512, 128)
    tk = _pick_tile(kdim, 512, 128)
    return pl.pallas_call(
        _linear_residual_kernel,
        out_shape=jax.ShapeDtypeStruct((n, m), x.dtype),
        grid=(n // tm, m // tn, kdim // tk),
        in_specs=[
            pl.BlockSpec((tm, tk), lambda i, j, k: (i, k)),
            pl.BlockSpec((tk, tn), lambda i, j, k: (k, j)),
            pl.BlockSpec((1, tn), lambda i, j, k: (0, j)),
            pl.BlockSpec((tm, tn), lambda i, j, k: (i, j)),
        ],
        out_specs=pl.BlockSpec((tm, tn), lambda i, j, k: (i, j)),
        scratch_shapes=[pltpu.VMEM((tm, tn), jnp.float32)],
        compiler_params=pltpu.CompilerParams(
            dimension_semantics=("parallel", "parallel", "arbitrary"),
            vmem_limit_bytes=_VMEM_LIMIT),
    )(x, w, bias, residual)


def causal_attention(qkv, n_head, head_size, n_embd):
    b, t, three_e = qkv.shape
    return pl.pallas_call(
        functools.partial(_attn_kernel, n_head=n_head, head_size=head_size,
                          n_embd=n_embd, scale=1.0 / (head_size ** 0.5)),
        out_shape=jax.ShapeDtypeStruct((b, t, n_embd), qkv.dtype),
        grid=(b,),
        in_specs=[pl.BlockSpec((1, t, three_e), lambda i: (i, 0, 0))],
        out_specs=pl.BlockSpec((1, t, n_embd), lambda i: (i, 0, 0)),
        compiler_params=pltpu.CompilerParams(
            dimension_semantics=("parallel",),
            vmem_limit_bytes=_VMEM_LIMIT),
    )(qkv)


# ----------------------------------------------------------------------------- model

class SmallGPT2Config:
    # Small synthetic config (same structure/semantics as GPT2Config, scaled down).
    vocab_size = 128
    n_positions = 64
    block_size = 64
    n_embd = 64
    n_head = 4
    n_layer = 2
    head_size = n_embd // n_head


def init_params(cfg, key):
    keys = jax.random.split(key, 4 + 10 * cfg.n_layer)
    kit = iter(keys)
    std = 0.02

    def dense(kin, kout):
        # stored as (in, out): x @ W  ≡  torch x @ weight.T
        return jax.random.normal(next(kit), (kin, kout), jnp.float32) * std

    params = {
        "wte": jax.random.normal(next(kit), (cfg.vocab_size, cfg.n_embd), jnp.float32) * std,
        "wpe": jax.random.normal(next(kit), (cfg.n_positions, cfg.n_embd), jnp.float32) * std,
        "blocks": [],
        "ln_f_g": jnp.ones((1, cfg.n_embd), jnp.float32),
        "ln_f_b": jnp.zeros((1, cfg.n_embd), jnp.float32),
        "lm_head_w": dense(cfg.n_embd, cfg.vocab_size),
    }
    for _ in range(cfg.n_layer):
        blk = {
            "ln1_g": jnp.ones((1, cfg.n_embd), jnp.float32),
            "ln1_b": jnp.zeros((1, cfg.n_embd), jnp.float32),
            "attn_w": dense(cfg.n_embd, 3 * cfg.n_embd),
            "attn_b": jax.random.normal(next(kit), (1, 3 * cfg.n_embd), jnp.float32) * std,
            "proj_w": dense(cfg.n_embd, cfg.n_embd),
            "proj_b": jax.random.normal(next(kit), (1, cfg.n_embd), jnp.float32) * std,
            "ln2_g": jnp.ones((1, cfg.n_embd), jnp.float32),
            "ln2_b": jnp.zeros((1, cfg.n_embd), jnp.float32),
            "fc_w": dense(cfg.n_embd, 4 * cfg.n_embd),
            "fc_b": jax.random.normal(next(kit), (1, 4 * cfg.n_embd), jnp.float32) * std,
            "mlp_proj_w": dense(4 * cfg.n_embd, cfg.n_embd),
            "mlp_proj_b": jax.random.normal(next(kit), (1, cfg.n_embd), jnp.float32) * std,
        }
        params["blocks"].append(blk)
    return params


def gpt2_forward(params, input_ids, cfg):
    B, T = input_ids.shape
    E, H, hd = cfg.n_embd, cfg.n_head, cfg.head_size
    assert T <= cfg.n_positions

    # 1+2. token + position embeddings (gather = glue, plain JAX)
    input_embeds = jnp.take(params["wte"], input_ids, axis=0)          # (B, T, E)
    position_embeds = jnp.take(params["wpe"], jnp.arange(T), axis=0)   # (T, E)
    x = (input_embeds + position_embeds[None]).reshape(B * T, E)       # (B*T, E)

    for blk in params["blocks"]:
        # ---- attention sub-block: fused LN1+QKV, in-kernel head attention, fused proj+residual
        qkv = ln_linear(x, blk["ln1_g"], blk["ln1_b"],
                        blk["attn_w"], blk["attn_b"])                  # (B*T, 3E)
        attn = causal_attention(qkv.reshape(B, T, 3 * E), H, hd, E)    # (B, T, E)
        x = linear_residual(attn.reshape(B * T, E),
                            blk["proj_w"], blk["proj_b"], x)           # residual fused

        # ---- MLP sub-block: fused LN2+FC+GELU, fused proj+residual
        h = ln_linear(x, blk["ln2_g"], blk["ln2_b"],
                      blk["fc_w"], blk["fc_b"], activation="gelu_tanh")  # (B*T, 4E)
        x = linear_residual(h, blk["mlp_proj_w"], blk["mlp_proj_b"], x)

    # ---- fused ln_f + lm_head (no bias -> zero bias tile)
    logits = ln_linear(x, params["ln_f_g"], params["ln_f_b"], params["lm_head_w"],
                       jnp.zeros((1, cfg.vocab_size), jnp.float32))    # (B*T, V)
    return logits.reshape(B, T, cfg.vocab_size)


# ----------------------------------------------------------------------------- main

if __name__ == "__main__":
    cfg = SmallGPT2Config()
    key = jax.random.PRNGKey(0)
    pkey, dkey = jax.random.split(key)

    params = init_params(cfg, pkey)
    B, T = 2, 16
    input_ids = jax.random.randint(dkey, (B, T), 0, cfg.vocab_size, dtype=jnp.int32)

    logits = jax.jit(lambda p, ids: gpt2_forward(p, ids, cfg))(params, input_ids)
    logits = jax.block_until_ready(logits)

    assert logits.shape == (B, T, cfg.vocab_size)
    assert bool(jnp.all(jnp.isfinite(logits)))
    print("KERNEL_OK")
</pallas_src>

<mosaic_0001>
module attributes {stable_mosaic.version = 11 : i64} {
  func.func @_ln_linear_kernel(%arg0: i32, %arg1: i32, %arg2: memref<32x64xf32, #tpu.memory_space<vmem>>, %arg3: memref<1x64xf32, #tpu.memory_space<vmem>>, %arg4: memref<1x64xf32, #tpu.memory_space<vmem>>, %arg5: memref<64x256xf32, #tpu.memory_space<vmem>>, %arg6: memref<1x256xf32, #tpu.memory_space<vmem>>, %arg7: memref<32x256xf32, #tpu.memory_space<vmem>>) attributes {dimension_semantics = [#tpu.dimension_semantics<parallel>, #tpu.dimension_semantics<parallel>], iteration_bounds = array<i64: 1, 1>, scalar_prefetch = 0 : i64, scratch_operands = 0 : i64, tpu.core_type = #tpu.core_type<tc>, window_params = [{transform_indices = @transform_0, window_bounds = array<i64: 32, 64>}, {pipeline_mode = #tpu.pipeline_mode<synchronous>, transform_indices = @transform_1, window_bounds = array<i64: 1, 64>}, {pipeline_mode = #tpu.pipeline_mode<synchronous>, transform_indices = @transform_2, window_bounds = array<i64: 1, 64>}, {transform_indices = @transform_3, window_bounds = array<i64: 64, 256>}, {transform_indices = @transform_4, window_bounds = array<i64: 1, 256>}, {transform_indices = @transform_5, window_bounds = array<i64: 32, 256>}]} {
    %c0 = arith.constant 0 : index
    %c0_0 = arith.constant 0 : index
    %0 = vector.load %arg2[%c0, %c0_0] : memref<32x64xf32, #tpu.memory_space<vmem>>, vector<32x64xf32>
    %cst = arith.constant dense<0.000000e+00> : vector<32xf32>
    %1 = vector.multi_reduction <add>, %0, %cst [1] : vector<32x64xf32> to vector<32xf32>
    %2 = vector.shape_cast %1 : vector<32xf32> to vector<32x1xf32>
    %cst_1 = arith.constant 6.400000e+01 : f32
    %3 = vector.broadcast %cst_1 : f32 to vector<32x1xf32>
    %4 = arith.divf %2, %3 : vector<32x1xf32>
    %5 = vector.broadcast %4 : vector<32x1xf32> to vector<32x64xf32>
    %6 = arith.subf %0, %5 : vector<32x64xf32>
    %7 = arith.mulf %6, %6 : vector<32x64xf32>
    %cst_2 = arith.constant dense<0.000000e+00> : vector<32xf32>
    %8 = vector.multi_reduction <add>, %7, %cst_2 [1] : vector<32x64xf32> to vector<32xf32>
    %9 = vector.shape_cast %8 : vector<32xf32> to vector<32x1xf32>
    %cst_3 = arith.constant 6.400000e+01 : f32
    %10 = vector.broadcast %cst_3 : f32 to vector<32x1xf32>
    %11 = arith.divf %9, %10 : vector<32x1xf32>
    %12 = vector.broadcast %4 : vector<32x1xf32> to vector<32x64xf32>
    %13 = arith.subf %0, %12 : vector<32x64xf32>
    %cst_4 = arith.constant 9.99999974E-6 : f32
    %14 = vector.broadcast %cst_4 : f32 to vector<32x1xf32>
    %15 = arith.addf %11, %14 : vector<32x1xf32>
    %16 = math.rsqrt %15 : vector<32x1xf32>
    %17 = vector.broadcast %16 : vector<32x1xf32> to vector<32x64xf32>
    %18 = arith.mulf %13, %17 : vector<32x64xf32>
    %c0_5 = arith.constant 0 : index
    %c0_6 = arith.constant 0 : index
    %19 = vector.load %arg3[%c0_5, %c0_6] : memref<1x64xf32, #tpu.memory_space<vmem>>, vector<1x64xf32>
    %20 = vector.broadcast %19 : vector<1x64xf32> to vector<32x64xf32>
    %21 = arith.mulf %18, %20 : vector<32x64xf32>
    %c0_7 = arith.constant 0 : index
    %c0_8 = arith.constant 0 : index
    %22 = vector.load %arg4[%c0_7, %c0_8] : memref<1x64xf32, #tpu.memory_space<vmem>>, vector<1x64xf32>
    %23 = vector.broadcast %22 : vector<1x64xf32> to vector<32x64xf32>
    %24 = arith.addf %21, %23 : vector<32x64xf32>
    %25 = arith.truncf %24 : vector<32x64xf32> to vector<32x64xbf16>
    %c0_9 = arith.constant 0 : index
    %c0_10 = arith.constant 0 : index
    %26 = vector.load %arg5[%c0_9, %c0_10] : memref<64x256xf32, #tpu.memory_space<vmem>>, vector<64x256xf32>
    %27 = arith.truncf %26 : vector<64x256xf32> to vector<64x256xbf16>
    %cst_11 = arith.constant dense<0.000000e+00> : vector<32x256xf32>
    %28 = tpu.matmul %25, %27, %cst_11 {dimension_numbers = #tpu.dot_dimension_numbers<[1], [0], [0], [1], [0, 0, 1, 1], [], []>} : vector<32x64xbf16>, vector<64x256xbf16>, vector<32x256xf32> -> vector<32x256xf32>
    %c0_12 = arith.constant 0 : index
    %c0_13 = arith.constant 0 : index
    %29 = vector.load %arg6[%c0_12, %c0_13] : memref<1x256xf32, #tpu.memory_space<vmem>>, vector<1x256xf32>
    %30 = vector.broadcast %29 : vector<1x256xf32> to vector<32x256xf32>
    %31 = arith.addf %28, %30 : vector<32x256xf32>
    %cst_14 = arith.constant 5.000000e-01 : f32
    %32 = vector.broadcast %cst_14 : f32 to vector<32x256xf32>
    %33 = arith.mulf %32, %31 : vector<32x256xf32>
    %cst_15 = arith.constant 4.471500e-02 : f32
    %34 = vector.broadcast %cst_15 : f32 to vector<32x256xf32>
    %35 = arith.mulf %34, %31 : vector<32x256xf32>
    %36 = arith.mulf %35, %31 : vector<32x256xf32>
    %37 = arith.mulf %36, %31 : vector<32x256xf32>
    %38 = arith.addf %31, %37 : vector<32x256xf32>
    %cst_16 = arith.constant 0.797884583 : f32
    %39 = vector.broadcast %cst_16 : f32 to vector<32x256xf32>
    %40 = arith.mulf %39, %38 : vector<32x256xf32>
    %41 = math.tanh %40 : vector<32x256xf32>
    %cst_17 = arith.constant 1.000000e+00 : f32
    %42 = vector.broadcast %cst_17 : f32 to vector<32x256xf32>
    %43 = arith.addf %42, %41 : vector<32x256xf32>
    %44 = arith.mulf %33, %43 : vector<32x256xf32>
    %c0_18 = arith.constant 0 : index
    %c0_19 = arith.constant 0 : index
    %45 = vector.load %arg7[%c0_18, %c0_19] : memref<32x256xf32, #tpu.memory_space<vmem>>, vector<32x256xf32>
    tpu.vector_store %arg7[%c0_18, %c0_19], %44 {strides = array<i32>} : memref<32x256xf32, #tpu.memory_space<vmem>>, vector<32x256xf32>,
    return
  }
  func.func @transform_0(%arg0: i32, %arg1: i32) -> (i32, i32) {
    %c0_i32 = arith.constant 0 : i32
    %c0_i32_0 = arith.constant 0 : i32
    return %arg0, %c0_i32 : i32, i32
  }
  func.func @transform_1(%arg0: i32, %arg1: i32) -> (i32, i32) {
    %c0_i32 = arith.constant 0 : i32
    %c0_i32_0 = arith.constant 0 : i32
    %c0_i32_1 = arith.constant 0 : i32
    return %c0_i32, %c0_i32_0 : i32, i32
  }
  func.func @transform_2(%arg0: i32, %arg1: i32) -> (i32, i32) {
    %c0_i32 = arith.constant 0 : i32
    %c0_i32_0 = arith.constant 0 : i32
    %c0_i32_1 = arith.constant 0 : i32
    return %c0_i32, %c0_i32_0 : i32, i32
  }
  func.func @transform_3(%arg0: i32, %arg1: i32) -> (i32, i32) {
    %c0_i32 = arith.constant 0 : i32
    %c0_i32_0 = arith.constant 0 : i32
    return %c0_i32, %arg1 : i32, i32
  }
  func.func @transform_4(%arg0: i32, %arg1: i32) -> (i32, i32) {
    %c0_i32 = arith.constant 0 : i32
    %c0_i32_0 = arith.constant 0 : i32
    return %c0_i32, %arg1 : i32, i32
  }
  func.func @transform_5(%arg0: i32, %arg1: i32) -> (i32, i32) {
    %c0_i32 = arith.constant 0 : i32
    return %arg0, %arg1 : i32, i32
  }
}

module attributes {stable_mosaic.version = 11 : i64} {
  func.func @_linear_residual_kernel(%arg0: i32, %arg1: i32, %arg2: i32, %arg3: memref<32x64xf32, #tpu.memory_space<vmem>>, %arg4: memref<64x64xf32, #tpu.memory_space<vmem>>, %arg5: memref<1x64xf32, #tpu.memory_space<vmem>>, %arg6: memref<32x64xf32, #tpu.memory_space<vmem>>, %arg7: memref<32x64xf32, #tpu.memory_space<vmem>>, %arg8: memref<32x64xf32, #tpu.memory_space<vmem>>) attributes {dimension_semantics = [#tpu.dimension_semantics<parallel>, #tpu.dimension_semantics<parallel>, #tpu.dimension_semantics<arbitrary>], iteration_bounds = array<i64: 1, 1, 1>, scalar_prefetch = 0 : i64, scratch_operands = 1 : i64, tpu.core_type = #tpu.core_type<tc>, window_params = [{transform_indices = @transform_0, window_bounds = array<i64: 32, 64>}, {transform_indices = @transform_1, window_bounds = array<i64: 64, 64>}, {transform_indices = @transform_2, window_bounds = array<i64: 1, 64>}, {transform_indices = @transform_3, window_bounds = array<i64: 32, 64>}, {transform_indices = @transform_4, window_bounds = array<i64: 32, 64>}]} {
    %c0_i32 = arith.constant 0 : i32
    %0 = arith.cmpi eq, %arg2, %c0_i32 : i32
    %1 = arith.extui %0 : i1 to i32
    %c0_i32_0 = arith.constant 0 : i32
    %2 = arith.cmpi ne, %1, %c0_i32_0 : i32
    scf.if %2 {
      %cst_10 = arith.constant 0.000000e+00 : f32
      %14 = vector.broadcast %cst_10 : f32 to vector<32x64xf32>
      %c0_11 = arith.constant 0 : index
      %c0_12 = arith.constant 0 : index
      %15 = vector.load %arg8[%c0_11, %c0_12] : memref<32x64xf32, #tpu.memory_space<vmem>>, vector<32x64xf32>
      tpu.vector_store %arg8[%c0_11, %c0_12], %14 {strides = array<i32>} : memref<32x64xf32, #tpu.memory_space<vmem>>, vector<32x64xf32>,
    } else {
    }
    %c0 = arith.constant 0 : index
    %c0_1 = arith.constant 0 : index
    %3 = vector.load %arg8[%c0, %c0_1] : memref<32x64xf32, #tpu.memory_space<vmem>>, vector<32x64xf32>
    %c0_2 = arith.constant 0 : index
    %c0_3 = arith.constant 0 : index
    %4 = vector.load %arg3[%c0_2, %c0_3] : memref<32x64xf32, #tpu.memory_space<vmem>>, vector<32x64xf32>
    %5 = arith.truncf %4 : vector<32x64xf32> to vector<32x64xbf16>
    %c0_4 = arith.constant 0 : index
    %c0_5 = arith.constant 0 : index
    %6 = vector.load %arg4[%c0_4, %c0_5] : memref<64x64xf32, #tpu.memory_space<vmem>>, vector<64x64xf32>
    %7 = arith.truncf %6 : vector<64x64xf32> to vector<64x64xbf16>
    %cst = arith.constant dense<0.000000e+00> : vector<32x64xf32>
    %8 = tpu.matmul %5, %7, %cst {dimension_numbers = #tpu.dot_dimension_numbers<[1], [0], [0], [1], [0, 0, 1, 1], [], []>} : vector<32x64xbf16>, vector<64x64xbf16>, vector<32x64xf32> -> vector<32x64xf32>
    %9 = arith.addf %3, %8 : vector<32x64xf32>
    %c0_6 = arith.constant 0 : index
    %c0_7 = arith.constant 0 : index
    %10 = vector.load %arg8[%c0_6, %c0_7] : memref<32x64xf32, #tpu.memory_space<vmem>>, vector<32x64xf32>
    tpu.vector_store %arg8[%c0_6, %c0_7], %9 {strides = array<i32>} : memref<32x64xf32, #tpu.memory_space<vmem>>, vector<32x64xf32>,
    %c0_i32_8 = arith.constant 0 : i32
    %11 = arith.cmpi eq, %arg2, %c0_i32_8 : i32
    %12 = arith.extui %11 : i1 to i32
    %c0_i32_9 = arith.constant 0 : i32
    %13 = arith.cmpi ne, %12, %c0_i32_9 : i32
    scf.if %13 {
      %c0_10 = arith.constant 0 : index
      %c0_11 = arith.constant 0 : index
      %14 = vector.load %arg8[%c0_10, %c0_11] : memref<32x64xf32, #tpu.memory_space<vmem>>, vector<32x64xf32>
      %c0_12 = arith.constant 0 : index
      %c0_13 = arith.constant 0 : index
      %15 = vector.load %arg5[%c0_12, %c0_13] : memref<1x64xf32, #tpu.memory_space<vmem>>, vector<1x64xf32>
      %16 = vector.broadcast %15 : vector<1x64xf32> to vector<32x64xf32>
      %17 = arith.addf %14, %16 : vector<32x64xf32>
      %c0_14 = arith.constant 0 : index
      %c0_15 = arith.constant 0 : index
      %18 = vector.load %arg6[%c0_14, %c0_15] : memref<32x64xf32, #tpu.memory_space<vmem>>, vector<32x64xf32>
      %19 = arith.addf %17, %18 : vector<32x64xf32>
      %c0_16 = arith.constant 0 : index
      %c0_17 = arith.constant 0 : index
      %20 = vector.load %arg7[%c0_16, %c0_17] : memref<32x64xf32, #tpu.memory_space<vmem>>, vector<32x64xf32>
      tpu.vector_store %arg7[%c0_16, %c0_17], %19 {strides = array<i32>} : memref<32x64xf32, #tpu.memory_space<vmem>>, vector<32x64xf32>,
    } else {
    }
    return
  }
  func.func @transform_0(%arg0: i32, %arg1: i32, %arg2: i32) -> (i32, i32) {
    %c0_i32 = arith.constant 0 : i32
    return %arg0, %arg2 : i32, i32
  }
  func.func @transform_1(%arg0: i32, %arg1: i32, %arg2: i32) -> (i32, i32) {
    %c0_i32 = arith.constant 0 : i32
    return %arg2, %arg1 : i32, i32
  }
  func.func @transform_2(%arg0: i32, %arg1: i32, %arg2: i32) -> (i32, i32) {
    %c0_i32 = arith.constant 0 : i32
    %c0_i32_0 = arith.constant 0 : i32
    return %c0_i32, %arg1 : i32, i32
  }
  func.func @transform_3(%arg0: i32, %arg1: i32, %arg2: i32) -> (i32, i32) {
    %c0_i32 = arith.constant 0 : i32
    return %arg0, %arg1 : i32, i32
  }
  func.func @transform_4(%arg0: i32, %arg1: i32, %arg2: i32) -> (i32, i32) {
    %c0_i32 = arith.constant 0 : i32
    return %arg0, %arg1 : i32, i32
  }
}

module attributes {stable_mosaic.version = 11 : i64} {
  func.func @_ln_linear_kernel(%arg0: i32, %arg1: i32, %arg2: memref<32x64xf32, #tpu.memory_space<vmem>>, %arg3: memref<1x64xf32, #tpu.memory_space<vmem>>, %arg4: memref<1x64xf32, #tpu.memory_space<vmem>>, %arg5: memref<64x192xf32, #tpu.memory_space<vmem>>, %arg6: memref<1x192xf32, #tpu.memory_space<vmem>>, %arg7: memref<32x192xf32, #tpu.memory_space<vmem>>) attributes {dimension_semantics = [#tpu.dimension_semantics<parallel>, #tpu.dimension_semantics<parallel>], iteration_bounds = array<i64: 1, 1>, scalar_prefetch = 0 : i64, scratch_operands = 0 : i64, tpu.core_type = #tpu.core_type<tc>, window_params = [{transform_indices = @transform_0, window_bounds = array<i64: 32, 64>}, {pipeline_mode = #tpu.pipeline_mode<synchronous>, transform_indices = @transform_1, window_bounds = array<i64: 1, 64>}, {pipeline_mode = #tpu.pipeline_mode<synchronous>, transform_indices = @transform_2, window_bounds = array<i64: 1, 64>}, {transform_indices = @transform_3, window_bounds = array<i64: 64, 192>}, {transform_indices = @transform_4, window_bounds = array<i64: 1, 192>}, {transform_indices = @transform_5, window_bounds = array<i64: 32, 192>}]} {
    %c0 = arith.constant 0 : index
    %c0_0 = arith.constant 0 : index
    %0 = vector.load %arg2[%c0, %c0_0] : memref<32x64xf32, #tpu.memory_space<vmem>>, vector<32x64xf32>
    %cst = arith.constant dense<0.000000e+00> : vector<32xf32>
    %1 = vector.multi_reduction <add>, %0, %cst [1] : vector<32x64xf32> to vector<32xf32>
    %2 = vector.shape_cast %1 : vector<32xf32> to vector<32x1xf32>
    %cst_1 = arith.constant 6.400000e+01 : f32
    %3 = vector.broadcast %cst_1 : f32 to vector<32x1xf32>
    %4 = arith.divf %2, %3 : vector<32x1xf32>
    %5 = vector.broadcast %4 : vector<32x1xf32> to vector<32x64xf32>
    %6 = arith.subf %0, %5 : vector<32x64xf32>
    %7 = arith.mulf %6, %6 : vector<32x64xf32>
    %cst_2 = arith.constant dense<0.000000e+00> : vector<32xf32>
    %8 = vector.multi_reduction <add>, %7, %cst_2 [1] : vector<32x64xf32> to vector<32xf32>
    %9 = vector.shape_cast %8 : vector<32xf32> to vector<32x1xf32>
    %cst_3 = arith.constant 6.400000e+01 : f32
    %10 = vector.broadcast %cst_3 : f32 to vector<32x1xf32>
    %11 = arith.divf %9, %10 : vector<32x1xf32>
    %12 = vector.broadcast %4 : vector<32x1xf32> to vector<32x64xf32>
    %13 = arith.subf %0, %12 : vector<32x64xf32>
    %cst_4 = arith.constant 9.99999974E-6 : f32
    %14 = vector.broadcast %cst_4 : f32 to vector<32x1xf32>
    %15 = arith.addf %11, %14 : vector<32x1xf32>
    %16 = math.rsqrt %15 : vector<32x1xf32>
    %17 = vector.broadcast %16 : vector<32x1xf32> to vector<32x64xf32>
    %18 = arith.mulf %13, %17 : vector<32x64xf32>
    %c0_5 = arith.constant 0 : index
    %c0_6 = arith.constant 0 : index
    %19 = vector.load %arg3[%c0_5, %c0_6] : memref<1x64xf32, #tpu.memory_space<vmem>>, vector<1x64xf32>
    %20 = vector.broadcast %19 : vector<1x64xf32> to vector<32x64xf32>
    %21 = arith.mulf %18, %20 : vector<32x64xf32>
    %c0_7 = arith.constant 0 : index
    %c0_8 = arith.constant 0 : index
    %22 = vector.load %arg4[%c0_7, %c0_8] : memref<1x64xf32, #tpu.memory_space<vmem>>, vector<1x64xf32>
    %23 = vector.broadcast %22 : vector<1x64xf32> to vector<32x64xf32>
    %24 = arith.addf %21, %23 : vector<32x64xf32>
    %25 = arith.truncf %24 : vector<32x64xf32> to vector<32x64xbf16>
    %c0_9 = arith.constant 0 : index
    %c0_10 = arith.constant 0 : index
    %26 = vector.load %arg5[%c0_9, %c0_10] : memref<64x192xf32, #tpu.memory_space<vmem>>, vector<64x192xf32>
    %27 = arith.truncf %26 : vector<64x192xf32> to vector<64x192xbf16>
    %cst_11 = arith.constant dense<0.000000e+00> : vector<32x192xf32>
    %28 = tpu.matmul %25, %27, %cst_11 {dimension_numbers = #tpu.dot_dimension_numbers<[1], [0], [0], [1], [0, 0, 1, 1], [], []>} : vector<32x64xbf16>, vector<64x192xbf16>, vector<32x192xf32> -> vector<32x192xf32>
    %c0_12 = arith.constant 0 : index
    %c0_13 = arith.constant 0 : index
    %29 = vector.load %arg6[%c0_12, %c0_13] : memref<1x192xf32, #tpu.memory_space<vmem>>, vector<1x192xf32>
    %30 = vector.broadcast %29 : vector<1x192xf32> to vector<32x192xf32>
    %31 = arith.addf %28, %30 : vector<32x192xf32>
    %c0_14 = arith.constant 0 : index
    %c0_15 = arith.constant 0 : index
    %32 = vector.load %arg7[%c0_14, %c0_15] : memref<32x192xf32, #tpu.memory_space<vmem>>, vector<32x192xf32>
    tpu.vector_store %arg7[%c0_14, %c0_15], %31 {strides = array<i32>} : memref<32x192xf32, #tpu.memory_space<vmem>>, vector<32x192xf32>,
    return
  }
  func.func @transform_0(%arg0: i32, %arg1: i32) -> (i32, i32) {
    %c0_i32 = arith.constant 0 : i32
    %c0_i32_0 = arith.constant 0 : i32
    return %arg0, %c0_i32 : i32, i32
  }
  func.func @transform_1(%arg0: i32, %arg1: i32) -> (i32, i32) {
    %c0_i32 = arith.constant 0 : i32
    %c0_i32_0 = arith.constant 0 : i32
    %c0_i32_1 = arith.constant 0 : i32
    return %c0_i32, %c0_i32_0 : i32, i32
  }
  func.func @transform_2(%arg0: i32, %arg1: i32) -> (i32, i32) {
    %c0_i32 = arith.constant 0 : i32
    %c0_i32_0 = arith.constant 0 : i32
    %c0_i32_1 = arith.constant 0 : i32
    return %c0_i32, %c0_i32_0 : i32, i32
  }
  func.func @transform_3(%arg0: i32, %arg1: i32) -> (i32, i32) {
    %c0_i32 = arith.constant 0 : i32
    %c0_i32_0 = arith.constant 0 : i32
    return %c0_i32, %arg1 : i32, i32
  }
  func.func @transform_4(%arg0: i32, %arg1: i32) -> (i32, i32) {
    %c0_i32 = arith.constant 0 : i32
    %c0_i32_0 = arith.constant 0 : i32
    return %c0_i32, %arg1 : i32, i32
  }
  func.func @transform_5(%arg0: i32, %arg1: i32) -> (i32, i32) {
    %c0_i32 = arith.constant 0 : i32
    return %arg0, %arg1 : i32, i32
  }
}

module attributes {stable_mosaic.version = 11 : i64} {
  func.func @_attn_kernel(%arg0: i32, %arg1: memref<1x16x192xf32, #tpu.memory_space<vmem>>, %arg2: memref<1x16x64xf32, #tpu.memory_space<vmem>>) attributes {dimension_semantics = [#tpu.dimension_semantics<parallel>], iteration_bounds = array<i64: 2>, scalar_prefetch = 0 : i64, scratch_operands = 0 : i64, tpu.core_type = #tpu.core_type<tc>, window_params = [{transform_indices = @transform_0, window_bounds = array<i64: 1, 16, 192>}, {transform_indices = @transform_1, window_bounds = array<i64: 1, 16, 64>}]} {
    %c0 = arith.constant 0 : index
    %c0_0 = arith.constant 0 : index
    %c0_1 = arith.constant 0 : index
    %0 = vector.load %arg1[%c0, %c0_0, %c0_1] : memref<1x16x192xf32, #tpu.memory_space<vmem>>, vector<1x16x192xf32>
    %1 = vector.shape_cast %0 : vector<1x16x192xf32> to vector<16x192xf32>
    %2 = tpu.iota {dimensions = array<i32: 0>} : vector<16x16xi32>
    %3 = tpu.iota {dimensions = array<i32: 1>} : vector<16x16xi32>
    %4 = arith.cmpi sle, %3, %2 : vector<16x16xi32>
    %5 = vector.extract_strided_slice %1 {offsets = [0, 0], sizes = [16, 16], strides = [1, 1]} : vector<16x192xf32> to vector<16x16xf32>
    %6 = arith.truncf %5 : vector<16x16xf32> to vector<16x16xbf16>
    %7 = vector.extract_strided_slice %1 {offsets = [0, 64], sizes = [16, 16], strides = [1, 1]} : vector<16x192xf32> to vector<16x16xf32>
    %8 = arith.truncf %7 : vector<16x16xf32> to vector<16x16xbf16>
    %9 = vector.extract_strided_slice %1 {offsets = [0, 128], sizes = [16, 16], strides = [1, 1]} : vector<16x192xf32> to vector<16x16xf32>
    %10 = arith.truncf %9 : vector<16x16xf32> to vector<16x16xbf16>
    %cst = arith.constant dense<0.000000e+00> : vector<16x16xf32>
    %11 = tpu.matmul %6, %8, %cst {dimension_numbers = #tpu.dot_dimension_numbers<[1], [1], [0], [0], [0, 0, 1, 0], [], []>} : vector<16x16xbf16>, vector<16x16xbf16>, vector<16x16xf32> -> vector<16x16xf32>
    %cst_2 = arith.constant 2.500000e-01 : f32
    %12 = vector.broadcast %cst_2 : f32 to vector<16x16xf32>
    %13 = arith.mulf %11, %12 : vector<16x16xf32>
    %cst_3 = arith.constant 0xFF800000 : f32
    %14 = vector.broadcast %cst_3 : f32 to vector<16x16xf32>
    %15 = arith.select %4, %13, %14 : vector<16x16xi1>, vector<16x16xf32>
    %cst_4 = arith.constant dense<0xFF800000> : vector<16xf32>
    %16 = vector.multi_reduction <maximumf>, %15, %cst_4 [1] : vector<16x16xf32> to vector<16xf32>
    %17 = vector.shape_cast %16 : vector<16xf32> to vector<16x1xf32>
    %18 = vector.broadcast %17 : vector<16x1xf32> to vector<16x16xf32>
    %19 = arith.subf %15, %18 : vector<16x16xf32>
    %20 = math.exp %19 : vector<16x16xf32>
    %cst_5 = arith.constant dense<0.000000e+00> : vector<16xf32>
    %21 = vector.multi_reduction <add>, %20, %cst_5 [1] : vector<16x16xf32> to vector<16xf32>
    %22 = vector.shape_cast %21 : vector<16xf32> to vector<16x1xf32>
    %23 = tpu.reciprocal %22 {approx = true} : vector<16x1xf32> -> vector<16x1xf32>
    %24 = vector.broadcast %23 : vector<16x1xf32> to vector<16x16xf32>
    %25 = arith.mulf %20, %24 : vector<16x16xf32>
    %26 = arith.truncf %25 : vector<16x16xf32> to vector<16x16xbf16>
    %cst_6 = arith.constant dense<0.000000e+00> : vector<16x16xf32>
    %27 = tpu.matmul %26, %10, %cst_6 {dimension_numbers = #tpu.dot_dimension_numbers<[1], [0], [0], [1], [0, 0, 1, 1], [], []>} : vector<16x16xbf16>, vector<16x16xbf16>, vector<16x16xf32> -> vector<16x16xf32>
    %28 = vector.extract_strided_slice %1 {offsets = [0, 16], sizes = [16, 16], strides = [1, 1]} : vector<16x192xf32> to vector<16x16xf32>
    %29 = arith.truncf %28 : vector<16x16xf32> to vector<16x16xbf16>
    %30 = vector.extract_strided_slice %1 {offsets = [0, 80], sizes = [16, 16], strides = [1, 1]} : vector<16x192xf32> to vector<16x16xf32>
    %31 = arith.truncf %30 : vector<16x16xf32> to vector<16x16xbf16>
    %32 = vector.extract_strided_slice %1 {offsets = [0, 144], sizes = [16, 16], strides = [1, 1]} : vector<16x192xf32> to vector<16x16xf32>
    %33 = arith.truncf %32 : vector<16x16xf32> to vector<16x16xbf16>
    %cst_7 = arith.constant dense<0.000000e+00> : vector<16x16xf32>
    %34 = tpu.matmul %29, %31, %cst_7 {dimension_numbers = #tpu.dot_dimension_numbers<[1], [1], [0], [0], [0, 0, 1, 0], [], []>} : vector<16x16xbf16>, vector<16x16xbf16>, vector<16x16xf32> -> vector<16x16xf32>
    %cst_8 = arith.constant 2.500000e-01 : f32
    %35 = vector.broadcast %cst_8 : f32 to vector<16x16xf32>
    %36 = arith.mulf %34, %35 : vector<16x16xf32>
    %cst_9 = arith.constant 0xFF800000 : f32
    %37 = vector.broadcast %cst_9 : f32 to vector<16x16xf32>
    %38 = arith.select %4, %36, %37 : vector<16x16xi1>, vector<16x16xf32>
    %cst_10 = arith.constant dense<0xFF800000> : vector<16xf32>
    %39 = vector.multi_reduction <maximumf>, %38, %cst_10 [1] : vector<16x16xf32> to vector<16xf32>
    %40 = vector.shape_cast %39 : vector<16xf32> to vector<16x1xf32>
    %41 = vector.broadcast %40 : vector<16x1xf32> to vector<16x16xf32>
    %42 = arith.subf %38, %41 : vector<16x16xf32>
    %43 = math.exp %42 : vector<16x16xf32>
    %cst_11 = arith.constant dense<0.000000e+00> : vector<16xf32>
    %44 = vector.multi_reduction <add>, %43, %cst_11 [1] : vector<16x16xf32> to vector<16xf32>
    %45 = vector.shape_cast %44 : vector<16xf32> to vector<16x1xf32>
    %46 = tpu.reciprocal %45 {approx = true} : vector<16x1xf32> -> vector<16x1xf32>
    %47 = vector.broadcast %46 : vector<16x1xf32> to vector<16x16xf32>
    %48 = arith.mulf %43, %47 : vector<16x16xf32>
    %49 = arith.truncf %48 : vector<16x16xf32> to vector<16x16xbf16>
    %cst_12 = arith.constant dense<0.000000e+00> : vector<16x16xf32>
    %50 = tpu.matmul %49, %33, %cst_12 {dimension_numbers = #tpu.dot_dimension_numbers<[1], [0], [0], [1], [0, 0, 1, 1], [], []>} : vector<16x16xbf16>, vector<16x16xbf16>, vector<16x16xf32> -> vector<16x16xf32>
    %51 = vector.extract_strided_slice %1 {offsets = [0, 32], sizes = [16, 16], strides = [1, 1]} : vector<16x192xf32> to vector<16x16xf32>
    %52 = arith.truncf %51 : vector<16x16xf32> to vector<16x16xbf16>
    %53 = vector.extract_strided_slice %1 {offsets = [0, 96], sizes = [16, 16], strides = [1, 1]} : vector<16x192xf32> to vector<16x16xf32>
    %54 = arith.truncf %53 : vector<16x16xf32> to vector<16x16xbf16>
    %55 = vector.extract_strided_slice %1 {offsets = [0, 160], sizes = [16, 16], strides = [1, 1]} : vector<16x192xf32> to vector<16x16xf32>
    %56 = arith.truncf %55 : vector<16x16xf32> to vector<16x16xbf16>
    %cst_13 = arith.constant dense<0.000000e+00> : vector<16x16xf32>
    %57 = tpu.matmul %52, %54, %cst_13 {dimension_numbers = #tpu.dot_dimension_numbers<[1], [1], [0], [0], [0, 0, 1, 0], [], []>} : vector<16x16xbf16>, vector<16x16xbf16>, vector<16x16xf32> -> vector<16x16xf32>
    %cst_14 = arith.constant 2.500000e-01 : f32
    %58 = vector.broadcast %cst_14 : f32 to vector<16x16xf32>
    %59 = arith.mulf %57, %58 : vector<16x16xf32>
    %cst_15 = arith.constant 0xFF800000 : f32
    %60 = vector.broadcast %cst_15 : f32 to vector<16x16xf32>
    %61 = arith.select %4, %59, %60 : vector<16x16xi1>, vector<16x16xf32>
    %cst_16 = arith.constant dense<0xFF800000> : vector<16xf32>
    %62 = vector.multi_reduction <maximumf>, %61, %cst_16 [1] : vector<16x16xf32> to vector<16xf32>
    %63 = vector.shape_cast %62 : vector<16xf32> to vector<16x1xf32>
    %64 = vector.broadcast %63 : vector<16x1xf32> to vector<16x16xf32>
    %65 = arith.subf %61, %64 : vector<16x16xf32>
    %66 = math.exp %65 : vector<16x16xf32>
    %cst_17 = arith.constant dense<0.000000e+00> : vector<16xf32>
    %67 = vector.multi_reduction <add>, %66, %cst_17 [1] : vector<16x16xf32> to vector<16xf32>
    %68 = vector.shape_cast %67 : vector<16xf32> to vector<16x1xf32>
    %69 = tpu.reciprocal %68 {approx = true} : vector<16x1xf32> -> vector<16x1xf32>
    %70 = vector.broadcast %69 : vector<16x1xf32> to vector<16x16xf32>
    %71 = arith.mulf %66, %70 : vector<16x16xf32>
    %72 = arith.truncf %71 : vector<16x16xf32> to vector<16x16xbf16>
    %cst_18 = arith.constant dense<0.000000e+00> : vector<16x16xf32>
    %73 = tpu.matmul %72, %56, %cst_18 {dimension_numbers = #tpu.dot_dimension_numbers<[1], [0], [0], [1], [0, 0, 1, 1], [], []>} : vector<16x16xbf16>, vector<16x16xbf16>, vector<16x16xf32> -> vector<16x16xf32>
    %74 = vector.extract_strided_slice %1 {offsets = [0, 48], sizes = [16, 16], strides = [1, 1]} : vector<16x192xf32> to vector<16x16xf32>
    %75 = arith.truncf %74 : vector<16x16xf32> to vector<16x16xbf16>
    %76 = vector.extract_strided_slice %1 {offsets = [0, 112], sizes = [16, 16], strides = [1, 1]} : vector<16x192xf32> to vector<16x16xf32>
    %77 = arith.truncf %76 : vector<16x16xf32> to vector<16x16xbf16>
    %78 = vector.extract_strided_slice %1 {offsets = [0, 176], sizes = [16, 16], strides = [1, 1]} : vector<16x192xf32> to vector<16x16xf32>
    %79 = arith.truncf %78 : vector<16x16xf32> to vector<16x16xbf16>
    %cst_19 = arith.constant dense<0.000000e+00> : vector<16x16xf32>
    %80 = tpu.matmul %75, %77, %cst_19 {dimension_numbers = #tpu.dot_dimension_numbers<[1], [1], [0], [0], [0, 0, 1, 0], [], []>} : vector<16x16xbf16>, vector<16x16xbf16>, vector<16x16xf32> -> vector<16x16xf32>
    %cst_20 = arith.constant 2.500000e-01 : f32
    %81 = vector.broadcast %cst_20 : f32 to vector<16x16xf32>
    %82 = arith.mulf %80, %81 : vector<16x16xf32>
    %cst_21 = arith.constant 0xFF800000 : f32
    %83 = vector.broadcast %cst_21 : f32 to vector<16x16xf32>
    %84 = arith.select %4, %82, %83 : vector<16x16xi1>, vector<16x16xf32>
    %cst_22 = arith.constant dense<0xFF800000> : vector<16xf32>
    %85 = vector.multi_reduction <maximumf>, %84, %cst_22 [1] : vector<16x16xf32> to vector<16xf32>
    %86 = vector.shape_cast %85 : vector<16xf32> to vector<16x1xf32>
    %87 = vector.broadcast %86 : vector<16x1xf32> to vector<16x16xf32>
    %88 = arith.subf %84, %87 : vector<16x16xf32>
    %89 = math.exp %88 : vector<16x16xf32>
    %cst_23 = arith.constant dense<0.000000e+00> : vector<16xf32>
    %90 = vector.multi_reduction <add>, %89, %cst_23 [1] : vector<16x16xf32> to vector<16xf32>
    %91 = vector.shape_cast %90 : vector<16xf32> to vector<16x1xf32>
    %92 = tpu.reciprocal %91 {approx = true} : vector<16x1xf32> -> vector<16x1xf32>
    %93 = vector.broadcast %92 : vector<16x1xf32> to vector<16x16xf32>
    %94 = arith.mulf %89, %93 : vector<16x16xf32>
    %95 = arith.truncf %94 : vector<16x16xf32> to vector<16x16xbf16>
    %cst_24 = arith.constant dense<0.000000e+00> : vector<16x16xf32>
    %96 = tpu.matmul %95, %79, %cst_24 {dimension_numbers = #tpu.dot_dimension_numbers<[1], [0], [0], [1], [0, 0, 1, 1], [], []>} : vector<16x16xbf16>, vector<16x16xbf16>, vector<16x16xf32> -> vector<16x16xf32>
    %97 = tpu.concatenate %27, %50, %73, %96 in 1 : vector<16x16xf32>, vector<16x16xf32>, vector<16x16xf32>, vector<16x16xf32> -> vector<16x64xf32>
    %c0_25 = arith.constant 0 : index
    %c0_26 = arith.constant 0 : index
    %c0_27 = arith.constant 0 : index
    %98 = vector.load %arg2[%c0_25, %c0_26, %c0_27] : memref<1x16x64xf32, #tpu.memory_space<vmem>>, vector<1x16x64xf32>
    %99 = vector.shape_cast %98 : vector<1x16x64xf32> to vector<16x64xf32>
    %100 = vector.shape_cast %97 : vector<16x64xf32> to vector<1x16x64xf32>
    tpu.vector_store %arg2[%c0_25, %c0_26, %c0_27], %100 {strides = array<i32>} : memref<1x16x64xf32, #tpu.memory_space<vmem>>, vector<1x16x64xf32>,
    return
  }
  func.func @transform_0(%arg0: i32) -> (i32, i32, i32) {
    %c0_i32 = arith.constant 0 : i32
    %c0_i32_0 = arith.constant 0 : i32
    %c0_i32_1 = arith.constant 0 : i32
    return %arg0, %c0_i32, %c0_i32_0 : i32, i32, i32
  }
  func.func @transform_1(%arg0: i32) -> (i32, i32, i32) {
    %c0_i32 = arith.constant 0 : i32
    %c0_i32_0 = arith.constant 0 : i32
    %c0_i32_1 = arith.constant 0 : i32
    return %arg0, %c0_i32, %c0_i32_0 : i32, i32, i32
  }
}

module attributes {stable_mosaic.version = 11 : i64} {
  func.func @_linear_residual_kernel(%arg0: i32, %arg1: i32, %arg2: i32, %arg3: memref<32x256xf32, #tpu.memory_space<vmem>>, %arg4: memref<256x64xf32, #tpu.memory_space<vmem>>, %arg5: memref<1x64xf32, #tpu.memory_space<vmem>>, %arg6: memref<32x64xf32, #tpu.memory_space<vmem>>, %arg7: memref<32x64xf32, #tpu.memory_space<vmem>>, %arg8: memref<32x64xf32, #tpu.memory_space<vmem>>) attributes {dimension_semantics = [#tpu.dimension_semantics<parallel>, #tpu.dimension_semantics<parallel>, #tpu.dimension_semantics<arbitrary>], iteration_bounds = array<i64: 1, 1, 1>, scalar_prefetch = 0 : i64, scratch_operands = 1 : i64, tpu.core_type = #tpu.core_type<tc>, window_params = [{transform_indices = @transform_0, window_bounds = array<i64: 32, 256>}, {transform_indices = @transform_1, window_bounds = array<i64: 256, 64>}, {transform_indices = @transform_2, window_bounds = array<i64: 1, 64>}, {transform_indices = @transform_3, window_bounds = array<i64: 32, 64>}, {transform_indices = @transform_4, window_bounds = array<i64: 32, 64>}]} {
    %c0_i32 = arith.constant 0 : i32
    %0 = arith.cmpi eq, %arg2, %c0_i32 : i32
    %1 = arith.extui %0 : i1 to i32
    %c0_i32_0 = arith.constant 0 : i32
    %2 = arith.cmpi ne, %1, %c0_i32_0 : i32
    scf.if %2 {
      %cst_10 = arith.constant 0.000000e+00 : f32
      %14 = vector.broadcast %cst_10 : f32 to vector<32x64xf32>
      %c0_11 = arith.constant 0 : index
      %c0_12 = arith.constant 0 : index
      %15 = vector.load %arg8[%c0_11, %c0_12] : memref<32x64xf32, #tpu.memory_space<vmem>>, vector<32x64xf32>
      tpu.vector_store %arg8[%c0_11, %c0_12], %14 {strides = array<i32>} : memref<32x64xf32, #tpu.memory_space<vmem>>, vector<32x64xf32>,
    } else {
    }
    %c0 = arith.constant 0 : index
    %c0_1 = arith.constant 0 : index
    %3 = vector.load %arg8[%c0, %c0_1] : memref<32x64xf32, #tpu.memory_space<vmem>>, vector<32x64xf32>
    %c0_2 = arith.constant 0 : index
    %c0_3 = arith.constant 0 : index
    %4 = vector.load %arg3[%c0_2, %c0_3] : memref<32x256xf32, #tpu.memory_space<vmem>>, vector<32x256xf32>
    %5 = arith.truncf %4 : vector<32x256xf32> to vector<32x256xbf16>
    %c0_4 = arith.constant 0 : index
    %c0_5 = arith.constant 0 : index
    %6 = vector.load %arg4[%c0_4, %c0_5] : memref<256x64xf32, #tpu.memory_space<vmem>>, vector<256x64xf32>
    %7 = arith.truncf %6 : vector<256x64xf32> to vector<256x64xbf16>
    %cst = arith.constant dense<0.000000e+00> : vector<32x64xf32>
    %8 = tpu.matmul %5, %7, %cst {dimension_numbers = #tpu.dot_dimension_numbers<[1], [0], [0], [1], [0, 0, 1, 1], [], []>} : vector<32x256xbf16>, vector<256x64xbf16>, vector<32x64xf32> -> vector<32x64xf32>
    %9 = arith.addf %3, %8 : vector<32x64xf32>
    %c0_6 = arith.constant 0 : index
    %c0_7 = arith.constant 0 : index
    %10 = vector.load %arg8[%c0_6, %c0_7] : memref<32x64xf32, #tpu.memory_space<vmem>>, vector<32x64xf32>
    tpu.vector_store %arg8[%c0_6, %c0_7], %9 {strides = array<i32>} : memref<32x64xf32, #tpu.memory_space<vmem>>, vector<32x64xf32>,
    %c0_i32_8 = arith.constant 0 : i32
    %11 = arith.cmpi eq, %arg2, %c0_i32_8 : i32
    %12 = arith.extui %11 : i1 to i32
    %c0_i32_9 = arith.constant 0 : i32
    %13 = arith.cmpi ne, %12, %c0_i32_9 : i32
    scf.if %13 {
      %c0_10 = arith.constant 0 : index
      %c0_11 = arith.constant 0 : index
      %14 = vector.load %arg8[%c0_10, %c0_11] : memref<32x64xf32, #tpu.memory_space<vmem>>, vector<32x64xf32>
      %c0_12 = arith.constant 0 : index
      %c0_13 = arith.constant 0 : index
      %15 = vector.load %arg5[%c0_12, %c0_13] : memref<1x64xf32, #tpu.memory_space<vmem>>, vector<1x64xf32>
      %16 = vector.broadcast %15 : vector<1x64xf32> to vector<32x64xf32>
      %17 = arith.addf %14, %16 : vector<32x64xf32>
      %c0_14 = arith.constant 0 : index
      %c0_15 = arith.constant 0 : index
      %18 = vector.load %arg6[%c0_14, %c0_15] : memref<32x64xf32, #tpu.memory_space<vmem>>, vector<32x64xf32>
      %19 = arith.addf %17, %18 : vector<32x64xf32>
      %c0_16 = arith.constant 0 : index
      %c0_17 = arith.constant 0 : index
      %20 = vector.load %arg7[%c0_16, %c0_17] : memref<32x64xf32, #tpu.memory_space<vmem>>, vector<32x64xf32>
      tpu.vector_store %arg7[%c0_16, %c0_17], %19 {strides = array<i32>} : memref<32x64xf32, #tpu.memory_space<vmem>>, vector<32x64xf32>,
    } else {
    }
    return
  }
  func.func @transform_0(%arg0: i32, %arg1: i32, %arg2: i32) -> (i32, i32) {
    %c0_i32 = arith.constant 0 : i32
    return %arg0, %arg2 : i32, i32
  }
  func.func @transform_1(%arg0: i32, %arg1: i32, %arg2: i32) -> (i32, i32) {
    %c0_i32 = arith.constant 0 : i32
    return %arg2, %arg1 : i32, i32
  }
  func.func @transform_2(%arg0: i32, %arg1: i32, %arg2: i32) -> (i32, i32) {
    %c0_i32 = arith.constant 0 : i32
    %c0_i32_0 = arith.constant 0 : i32
    return %c0_i32, %arg1 : i32, i32
  }
  func.func @transform_3(%arg0: i32, %arg1: i32, %arg2: i32) -> (i32, i32) {
    %c0_i32 = arith.constant 0 : i32
    return %arg0, %arg1 : i32, i32
  }
  func.func @transform_4(%arg0: i32, %arg1: i32, %arg2: i32) -> (i32, i32) {
    %c0_i32 = arith.constant 0 : i32
    return %arg0, %arg1 : i32, i32
  }
}

module attributes {stable_mosaic.version = 11 : i64} {
  func.func @_ln_linear_kernel(%arg0: i32, %arg1: i32, %arg2: memref<32x64xf32, #tpu.memory_space<vmem>>, %arg3: memref<1x64xf32, #tpu.memory_space<vmem>>, %arg4: memref<1x64xf32, #tpu.memory_space<vmem>>, %arg5: memref<64x128xf32, #tpu.memory_space<vmem>>, %arg6: memref<1x128xf32, #tpu.memory_space<vmem>>, %arg7: memref<32x128xf32, #tpu.memory_space<vmem>>) attributes {dimension_semantics = [#tpu.dimension_semantics<parallel>, #tpu.dimension_semantics<parallel>], iteration_bounds = array<i64: 1, 1>, scalar_prefetch = 0 : i64, scratch_operands = 0 : i64, tpu.core_type = #tpu.core_type<tc>, window_params = [{transform_indices = @transform_0, window_bounds = array<i64: 32, 64>}, {pipeline_mode = #tpu.pipeline_mode<synchronous>, transform_indices = @transform_1, window_bounds = array<i64: 1, 64>}, {pipeline_mode = #tpu.pipeline_mode<synchronous>, transform_indices = @transform_2, window_bounds = array<i64: 1, 64>}, {transform_indices = @transform_3, window_bounds = array<i64: 64, 128>}, {transform_indices = @transform_4, window_bounds = array<i64: 1, 128>}, {transform_indices = @transform_5, window_bounds = array<i64: 32, 128>}]} {
    %c0 = arith.constant 0 : index
    %c0_0 = arith.constant 0 : index
    %0 = vector.load %arg2[%c0, %c0_0] : memref<32x64xf32, #tpu.memory_space<vmem>>, vector<32x64xf32>
    %cst = arith.constant dense<0.000000e+00> : vector<32xf32>
    %1 = vector.multi_reduction <add>, %0, %cst [1] : vector<32x64xf32> to vector<32xf32>
    %2 = vector.shape_cast %1 : vector<32xf32> to vector<32x1xf32>
    %cst_1 = arith.constant 6.400000e+01 : f32
    %3 = vector.broadcast %cst_1 : f32 to vector<32x1xf32>
    %4 = arith.divf %2, %3 : vector<32x1xf32>
    %5 = vector.broadcast %4 : vector<32x1xf32> to vector<32x64xf32>
    %6 = arith.subf %0, %5 : vector<32x64xf32>
    %7 = arith.mulf %6, %6 : vector<32x64xf32>
    %cst_2 = arith.constant dense<0.000000e+00> : vector<32xf32>
    %8 = vector.multi_reduction <add>, %7, %cst_2 [1] : vector<32x64xf32> to vector<32xf32>
    %9 = vector.shape_cast %8 : vector<32xf32> to vector<32x1xf32>
    %cst_3 = arith.constant 6.400000e+01 : f32
    %10 = vector.broadcast %cst_3 : f32 to vector<32x1xf32>
    %11 = arith.divf %9, %10 : vector<32x1xf32>
    %12 = vector.broadcast %4 : vector<32x1xf32> to vector<32x64xf32>
    %13 = arith.subf %0, %12 : vector<32x64xf32>
    %cst_4 = arith.constant 9.99999974E-6 : f32
    %14 = vector.broadcast %cst_4 : f32 to vector<32x1xf32>
    %15 = arith.addf %11, %14 : vector<32x1xf32>
    %16 = math.rsqrt %15 : vector<32x1xf32>
    %17 = vector.broadcast %16 : vector<32x1xf32> to vector<32x64xf32>
    %18 = arith.mulf %13, %17 : vector<32x64xf32>
    %c0_5 = arith.constant 0 : index
    %c0_6 = arith.constant 0 : index
    %19 = vector.load %arg3[%c0_5, %c0_6] : memref<1x64xf32, #tpu.memory_space<vmem>>, vector<1x64xf32>
    %20 = vector.broadcast %19 : vector<1x64xf32> to vector<32x64xf32>
    %21 = arith.mulf %18, %20 : vector<32x64xf32>
    %c0_7 = arith.constant 0 : index
    %c0_8 = arith.constant 0 : index
    %22 = vector.load %arg4[%c0_7, %c0_8] : memref<1x64xf32, #tpu.memory_space<vmem>>, vector<1x64xf32>
    %23 = vector.broadcast %22 : vector<1x64xf32> to vector<32x64xf32>
    %24 = arith.addf %21, %23 : vector<32x64xf32>
    %25 = arith.truncf %24 : vector<32x64xf32> to vector<32x64xbf16>
    %c0_9 = arith.constant 0 : index
    %c0_10 = arith.constant 0 : index
    %26 = vector.load %arg5[%c0_9, %c0_10] : memref<64x128xf32, #tpu.memory_space<vmem>>, vector<64x128xf32>
    %27 = arith.truncf %26 : vector<64x128xf32> to vector<64x128xbf16>
    %cst_11 = arith.constant dense<0.000000e+00> : vector<32x128xf32>
    %28 = tpu.matmul %25, %27, %cst_11 {dimension_numbers = #tpu.dot_dimension_numbers<[1], [0], [0], [1], [0, 0, 1, 1], [], []>} : vector<32x64xbf16>, vector<64x128xbf16>, vector<32x128xf32> -> vector<32x128xf32>
    %c0_12 = arith.constant 0 : index
    %c0_13 = arith.constant 0 : index
    %29 = vector.load %arg6[%c0_12, %c0_13] : memref<1x128xf32, #tpu.memory_space<vmem>>, vector<1x128xf32>
    %30 = vector.broadcast %29 : vector<1x128xf32> to vector<32x128xf32>
    %31 = arith.addf %28, %30 : vector<32x128xf32>
    %c0_14 = arith.constant 0 : index
    %c0_15 = arith.constant 0 : index
    %32 = vector.load %arg7[%c0_14, %c0_15] : memref<32x128xf32, #tpu.memory_space<vmem>>, vector<32x128xf32>
    tpu.vector_store %arg7[%c0_14, %c0_15], %31 {strides = array<i32>} : memref<32x128xf32, #tpu.memory_space<vmem>>, vector<32x128xf32>,
    return
  }
  func.func @transform_0(%arg0: i32, %arg1: i32) -> (i32, i32) {
    %c0_i32 = arith.constant 0 : i32
    %c0_i32_0 = arith.constant 0 : i32
    return %arg0, %c0_i32 : i32, i32
  }
  func.func @transform_1(%arg0: i32, %arg1: i32) -> (i32, i32) {
    %c0_i32 = arith.constant 0 : i32
    %c0_i32_0 = arith.constant 0 : i32
    %c0_i32_1 = arith.constant 0 : i32
    return %c0_i32, %c0_i32_0 : i32, i32
  }
  func.func @transform_2(%arg0: i32, %arg1: i32) -> (i32, i32) {
    %c0_i32 = arith.constant 0 : i32
    %c0_i32_0 = arith.constant 0 : i32
    %c0_i32_1 = arith.constant 0 : i32
    return %c0_i32, %c0_i32_0 : i32, i32
  }
  func.func @transform_3(%arg0: i32, %arg1: i32) -> (i32, i32) {
    %c0_i32 = arith.constant 0 : i32
    %c0_i32_0 = arith.constant 0 : i32
    return %c0_i32, %arg1 : i32, i32
  }
  func.func @transform_4(%arg0: i32, %arg1: i32) -> (i32, i32) {
    %c0_i32 = arith.constant 0 : i32
    %c0_i32_0 = arith.constant 0 : i32
    return %c0_i32, %arg1 : i32, i32
  }
  func.func @transform_5(%arg0: i32, %arg1: i32) -> (i32, i32) {
    %c0_i32 = arith.constant 0 : i32
    return %arg0, %arg1 : i32, i32
  }
}

</mosaic_0001>

<llo_original>
// kernel: _lambda_.14
$region0: #{_lambda_.14}
  #allocation0 [shape = 'u32[]', space=smem, size = 0x4, offset = 0x4, fixed_abs, tag = 'smem constant byte address 0x4 - core index']
  #allocation1 [shape = 'u32[144,128]{1,0:T(1,128)}', space=vmem, size = 0x12000, scoped, tag = 'internal scratch']
  %s0 = inlined_call_operand.vmem [shape: f32[32,64], index: 0, kind: input, shape index: {}]
  %s1 = inlined_call_operand.vmem [shape: f32[1,64], index: 1, kind: input, shape index: {}]
  %s2 = inlined_call_operand.vmem [shape: f32[1,64], index: 2, kind: input, shape index: {}]
  %s3 = inlined_call_operand.vmem [shape: f32[64,256], index: 3, kind: input, shape index: {}]
  %s4 = inlined_call_operand.vmem [shape: f32[1,256], index: 4, kind: input, shape index: {}]
  %s5 = inlined_call_operand.vmem [shape: f32[32,256], index: 5, kind: output, shape index: {}]
  %s6 = sld [smem:[#allocation0]]
  $region30: #{_lambda_.14} parent=0
    _
  %s8 = ssub.s32 1, %s6
  %s9 = scalar_select 0, %s8, %s6
  // Predicated region
  $region2: #{_lambda_.14} parent=0 // pred_check
    _
  $region3: #{_lambda_.14} parent=0 // pred_check_branch
    %11 = sbr.rel (0) target = $region5
  $region4: #{_lambda_.14} parent=0 // pred_region
    _
  $region5: #{_lambda_.14} parent=0 // pred_fallthru
    _
  // Predicated region
  $region6: #{_lambda_.14} parent=0 // pred_check
    _
  $region7: #{_lambda_.14} parent=0 // pred_check_branch
    %13 = sbr.rel (0) target = $region9
  $region8: #{_lambda_.14} parent=0 // pred_region
    _
  $region9: #{_lambda_.14} parent=0 // pred_fallthru
    _
  // Predicated region
  $region10: #{_lambda_.14} parent=0 // pred_check
    _
  $region11: #{_lambda_.14} parent=0 // pred_check_branch
    %15 = sbr.rel (0) target = $region13
  $region12: #{_lambda_.14} parent=0 // pred_region
    _
  $region13: #{_lambda_.14} parent=0 // pred_fallthru
    _
  // Predicated region
  $region14: #{_lambda_.14} parent=0 // pred_check
    _
  $region15: #{_lambda_.14} parent=0 // pred_check_branch
    %17 = sbr.rel (0) target = $region17
  $region16: #{_lambda_.14} parent=0 // pred_region
    _
  $region17: #{_lambda_.14} parent=0 // pred_fallthru
    _
  // Predicated region
  $region18: #{_lambda_.14} parent=0 // pred_check
    _
  $region19: #{_lambda_.14} parent=0 // pred_check_branch
    %19 = sbr.rel (0) target = $region21
  $region20: #{_lambda_.14} parent=0 // pred_region
    _
  $region21: #{_lambda_.14} parent=0 // pred_fallthru
    _
  %v21 = vld [vmem:[%s0] sm:$0xff]
  %v22 = vld [vmem:[%s0 + $0x8] sm:$0xff]
  %v23 = vld [vmem:[%s0 + $0x10] sm:$0xff]
  %v24 = vld [vmem:[%s0 + $0x18] sm:$0xff]
  %vm25 = vcmask 523264
  %v26 = vsel %vm25, %v21, 0.0
  %27 = vadd.xlane.f32.xlu0 %v26
  %v28 = vpop.xlane.xlu0 %27
  %v29 = vsel %vm25, %v22, 0.0
  %30 = vadd.xlane.f32.xlu0 %v29
  %v31 = vpop.xlane.xlu0 %30
  %v32 = vsel %vm25, %v23, 0.0
  %33 = vadd.xlane.f32.xlu0 %v32
  %v34 = vpop.xlane.xlu0 %33
  %v35 = vsel %vm25, %v24, 0.0
  %36 = vadd.xlane.f32.xlu0 %v35
  %v37 = vpop.xlane.xlu0 %36
  %v38 = vrcp.pop 64.0
  %v39 = vmul.f32 %v28, %v38
  %v40 = vmul.f32 %v31, %v38
  %v41 = vmul.f32 %v34, %v38
  %v42 = vmul.f32 %v37, %v38
  %v43 = vsub.f32 %v21, %v39
  %v44 = vsub.f32 %v22, %v40
  %v45 = vsub.f32 %v23, %v41
  %v46 = vsub.f32 %v24, %v42
  %v47 = vmul.f32 %v43, %v43
  %v48 = vmul.f32 %v44, %v44
  %v49 = vmul.f32 %v45, %v45
  %v50 = vmul.f32 %v46, %v46
  %v51 = vsel %vm25, %v47, 0.0
  %52 = vadd.xlane.f32.xlu0 %v51
  %v53 = vpop.xlane.xlu0 %52
  %v54 = vsel %vm25, %v48, 0.0
  %55 = vadd.xlane.f32.xlu0 %v54
  %v56 = vpop.xlane.xlu0 %55
  %v57 = vsel %vm25, %v49, 0.0
  %58 = vadd.xlane.f32.xlu0 %v57
  %v59 = vpop.xlane.xlu0 %58
  %v60 = vsel %vm25, %v50, 0.0
  %61 = vadd.xlane.f32.xlu0 %v60
  %v62 = vpop.xlane.xlu0 %61
  %v63 = vmul.f32 %v53, %v38
  %v64 = vmul.f32 %v56, %v38
  %v65 = vmul.f32 %v59, %v38
  %v66 = vmul.f32 %v62, %v38
  %v67 = vadd.f32 %v63, 1e-05
  %v68 = vadd.f32 %v64, 1e-05
  %v69 = vadd.f32 %v65, 1e-05
  %v70 = vadd.f32 %v66, 1e-05
  %v71 = vrsqrt.pop %v67
  %v72 = vrsqrt.pop %v68
  %v73 = vrsqrt.pop %v69
  %v74 = vrsqrt.pop %v70
  %v75 = vmul.f32 %v43, %v71
  %v76 = vmul.f32 %v44, %v72
  %v77 = vmul.f32 %v45, %v73
  %v78 = vmul.f32 %v46, %v74
  %v79 = vld [vmem:[%s1] sm:$0x1]
  %v81 = vlaneseq
  %v82 = vshrl.u32 %v81, 7
  %v83 = vsub.s32 0, %v82
  %v84 = vrot.slane %v79, %v83
  %v86 = vmul.f32 %v75, %v84
  %v87 = vmul.f32 %v76, %v84
  %v88 = vmul.f32 %v77, %v84
  %v89 = vmul.f32 %v78, %v84
  %v90 = vld [vmem:[%s2] sm:$0x1]
  %v92 = vlaneseq
  %v93 = vshrl.u32 %v92, 7
  %v94 = vsub.s32 0, %v93
  %v95 = vrot.slane %v90, %v94
  %v97 = vadd.f32 %v86, %v95
  %v98 = vadd.f32 %v87, %v95
  %v99 = vadd.f32 %v88, %v95
  %v100 = vadd.f32 %v89, %v95
  %v101 = vpack.c.bf16 %v98, %v97
  %v102 = vpack.c.bf16 %v100, %v99
  %v103 = vld [vmem:[%s3] sm:$0xff]
  %v104 = vld [vmem:[%s3 + $0x8] sm:$0xff]
  %v105 = vld [vmem:[%s3 + $0x10] sm:$0xff]
  %v106 = vld [vmem:[%s3 + $0x18] sm:$0xff]
  %v107 = vld [vmem:[%s3 + $0x20] sm:$0xff]
  %v108 = vld [vmem:[%s3 + $0x28] sm:$0xff]
  %v109 = vld [vmem:[%s3 + $0x30] sm:$0xff]
  %v110 = vld [vmem:[%s3 + $0x38] sm:$0xff]
  %v111 = vld [vmem:[%s3 + $0x40] sm:$0xff]
  %v112 = vld [vmem:[%s3 + $0x48] sm:$0xff]
  %v113 = vld [vmem:[%s3 + $0x50] sm:$0xff]
  %v114 = vld [vmem:[%s3 + $0x58] sm:$0xff]
  %v115 = vld [vmem:[%s3 + $0x60] sm:$0xff]
  %v116 = vld [vmem:[%s3 + $0x68] sm:$0xff]
  %v117 = vld [vmem:[%s3 + $0x70] sm:$0xff]
  %v118 = vld [vmem:[%s3 + $0x78] sm:$0xff]
  %v119 = vpack.c.bf16 %v105, %v103
  %v120 = vpack.c.bf16 %v106, %v104
  %v121 = vpack.c.bf16 %v109, %v107
  %v122 = vpack.c.bf16 %v110, %v108
  %v123 = vpack.c.bf16 %v113, %v111
  %v124 = vpack.c.bf16 %v114, %v112
  %v125 = vpack.c.bf16 %v117, %v115
  %v126 = vpack.c.bf16 %v118, %v116
  %v127 = vld [vmem:[%s4] sm:$0x3]
  %v129 = vlaneseq
  %v130 = vshrl.u32 %v129, 7
  %v131 = vsub.s32 0, %v130
  %v132 = vrot.slane %v127, %v131
  %v133 = vlaneseq
  %v134 = vshrl.u32 %v133, 7
  %v135 = vsub.s32 1, %v134
  %v136 = vrot.slane %v127, %v135
  %v140 = vsel %vm25, %v101, 0
  %v143 = vsel %vm25, %v102, 0
  %145 = vmatprep.subr.bf16.mxu0 %v120
  %146 = vmatpush1.bf16.msra.mxu0 %v119
  %147 = vmatprep.subr.bf16.mxu0 %v122
  %148 = vmatpush1.bf16.msra.mxu0 %v121
  %149 = vmatprep.subr.bf16.mxu0 %v124
  %150 = vmatpush1.bf16.msra.mxu0 %v123
  %151 = vmatprep.subr.bf16.mxu0 %v126
  %152 = vmatpush1.bf16.msra.mxu0 %v125
  %153 = vmatprep.subr.bf16.mxu0 0
  %154 = vmatpush1.bf16.msra.mxu0 0
  %155 = vmatprep.subr.bf16.mxu0 0
  %156 = vmatpush1.bf16.msra.mxu0 0
  %157 = vmatprep.subr.bf16.mxu0 0
  %158 = vmatpush1.bf16.msra.mxu0 0
  %159 = vmatprep.subr.bf16.mxu0 0
  %160 = vmatpush1.bf16.msra.mxu0 0
  %161 = vmatprep.subr.bf16.mxu0 0
  %162 = vmatpush1.bf16.msra.mxu0 0
  %163 = vmatprep.subr.bf16.mxu0 0
  %164 = vmatpush1.bf16.msra.mxu0 0
  %165 = vmatprep.subr.bf16.mxu0 0
  %166 = vmatpush1.bf16.msra.mxu0 0
  %167 = vmatprep.subr.bf16.mxu0 0
  %168 = vmatpush1.bf16.msra.mxu0 0
  %169 = vmatprep.subr.bf16.mxu0 0
  %170 = vmatpush1.bf16.msra.mxu0 0
  %171 = vmatprep.subr.bf16.mxu0 0
  %172 = vmatpush1.bf16.msra.mxu0 0
  %173 = vmatprep.subr.bf16.mxu0 0
  %174 = vmatpush1.bf16.msra.mxu0 0
  %175 = vmatprep.subr.bf16.mxu0 0
  %176 = vmatpush1.bf16.msra.mxu0 0
  %177 = vmatprep.mubr.bf16.mxu0 0
  %178 = vmatmul.mubr.bf16.gmra.mrb[0].mxu0 %v140
  %v179 = vpop.f32.mrb[0].mxu0
  %v180 = vadd.f32 %v132, %v179
  %v181 = vpop.f32.mrb[0].mxu0
  %v182 = vadd.f32 %v136, %v181
  %v183 = vpop.f32.mrb[0].mxu0
  %v184 = vadd.f32 %v132, %v183
  %v185 = vpop.f32.mrb[0].mxu0
  %v186 = vadd.f32 %v136, %v185
  %187 = vmatprep.mubr.bf16.mxu0 0
  %188 = vmatmul.mubr.bf16.gmra.mrb[0].mxu0 %v143
  %v189 = vpop.f32.mrb[0].mxu0
  %v190 = vadd.f32 %v132, %v189
  %v191 = vpop.f32.mrb[0].mxu0
  %v192 = vadd.f32 %v136, %v191
  %v193 = vpop.f32.mrb[0].mxu0
  %v194 = vadd.f32 %v132, %v193
  %v195 = vpop.f32.mrb[0].mxu0
  %v196 = vadd.f32 %v136, %v195
  %197 = vdwg.mxu0
  %v198 = vmul.f32 %v180, 0.5
  %v199 = vmul.f32 %v182, 0.5
  %v200 = vmul.f32 %v184, 0.5
  %v201 = vmul.f32 %v186, 0.5
  %v202 = vmul.f32 %v190, 0.5
  %v203 = vmul.f32 %v192, 0.5
  %v204 = vmul.f32 %v194, 0.5
  %v205 = vmul.f32 %v196, 0.5
  %v206 = vmul.f32 %v180, 0.044715
  %v207 = vmul.f32 %v182, 0.044715
  %v208 = vmul.f32 %v184, 0.044715
  %v209 = vmul.f32 %v186, 0.044715
  %v210 = vmul.f32 %v190, 0.044715
  %v211 = vmul.f32 %v192, 0.044715
  %v212 = vmul.f32 %v194, 0.044715
  %v213 = vmul.f32 %v196, 0.044715
  %v214 = vmul.f32 %v206, %v180
  %v215 = vmul.f32 %v207, %v182
  %v216 = vmul.f32 %v208, %v184
  %v217 = vmul.f32 %v209, %v186
  %v218 = vmul.f32 %v210, %v190
  %v219 = vmul.f32 %v211, %v192
  %v220 = vmul.f32 %v212, %v194
  %v221 = vmul.f32 %v213, %v196
  %v222 = vmul.f32 %v214, %v180
  %v223 = vmul.f32 %v215, %v182
  %v224 = vmul.f32 %v216, %v184
  %v225 = vmul.f32 %v217, %v186
  %v226 = vmul.f32 %v218, %v190
  %v227 = vmul.f32 %v219, %v192
  %v228 = vmul.f32 %v220, %v194
  %v229 = vmul.f32 %v221, %v196
  %v230 = vadd.f32 %v180, %v222
  %v231 = vadd.f32 %v182, %v223
  %v232 = vadd.f32 %v184, %v224
  %v233 = vadd.f32 %v186, %v225
  %v234 = vadd.f32 %v190, %v226
  %v235 = vadd.f32 %v192, %v227
  %v236 = vadd.f32 %v194, %v228
  %v237 = vadd.f32 %v196, %v229
  %v238 = vmul.f32 %v230, 0.7978846
  %v239 = vmul.f32 %v231, 0.7978846
  %v240 = vmul.f32 %v232, 0.7978846
  %v241 = vmul.f32 %v233, 0.7978846
  %v242 = vmul.f32 %v234, 0.7978846
  %v243 = vmul.f32 %v235, 0.7978846
  %v244 = vmul.f32 %v236, 0.7978846
  %v245 = vmul.f32 %v237, 0.7978846
  %v246 = vtanh.pop %v238
  %v247 = vtanh.pop %v239
  %v248 = vtanh.pop %v240
  %v249 = vtanh.pop %v241
  %v250 = vtanh.pop %v242
  %v251 = vtanh.pop %v243
  %v252 = vtanh.pop %v244
  %v253 = vtanh.pop %v245
  %v254 = vadd.f32 %v246, 1.0
  %v255 = vadd.f32 %v247, 1.0
  %v256 = vadd.f32 %v248, 1.0
  %v257 = vadd.f32 %v249, 1.0
  %v258 = vadd.f32 %v250, 1.0
  %v259 = vadd.f32 %v251, 1.0
  %v260 = vadd.f32 %v252, 1.0
  %v261 = vadd.f32 %v253, 1.0
  %v262 = vmul.f32 %v198, %v254
  %v263 = vmul.f32 %v199, %v255
  %v264 = vmul.f32 %v200, %v256
  %v265 = vmul.f32 %v201, %v257
  %v266 = vmul.f32 %v202, %v258
  %v267 = vmul.f32 %v203, %v259
  %v268 = vmul.f32 %v204, %v260
  %v269 = vmul.f32 %v205, %v261
  %270 = vst [vmem:[%s5] sm:$0xff] %v262
  %271 = vst [vmem:[%s5 + $0x8] sm:$0xff] %v263
  %272 = vst [vmem:[%s5 + $0x10] sm:$0xff] %v264
  %273 = vst [vmem:[%s5 + $0x18] sm:$0xff] %v265
  %274 = vst [vmem:[%s5 + $0x20] sm:$0xff] %v266
  %275 = vst [vmem:[%s5 + $0x28] sm:$0xff] %v267
  %276 = vst [vmem:[%s5 + $0x30] sm:$0xff] %v268
  %277 = vst [vmem:[%s5 + $0x38] sm:$0xff] %v269
  // Predicated region
  $region22: #{_lambda_.14} parent=0 // pred_check
    _
  $region23: #{_lambda_.14} parent=0 // pred_check_branch
    %279 = sbr.rel (0) target = $region25
  $region24: #{_lambda_.14} parent=0 // pred_region
    _
  $region25: #{_lambda_.14} parent=0 // pred_fallthru
    _
  // Predicated region
  $region26: #{_lambda_.14} parent=0 // pred_check
    _
  $region27: #{_lambda_.14} parent=0 // pred_check_branch
    %281 = sbr.rel (0) target = $region29
  $region28: #{_lambda_.14} parent=0 // pred_region
    _
  $region29: #{_lambda_.14} parent=0 // pred_fallthru
    _

// kernel: _lambda_.13
$region0: #{_lambda_.13}
  #allocation0 [shape = 'u32[]', space=smem, size = 0x4, offset = 0x4, fixed_abs, tag = 'smem constant byte address 0x4 - core index']
  #allocation1 [shape = 'u32[144,128]{1,0:T(1,128)}', space=vmem, size = 0x12000, scoped, tag = 'internal scratch']
  #allocation2 [shape = 'f32[32,64]{1,0:T(8,128)}', space=vmem, size = 0x4000, scoped, tag = 'scratch operand']
  %s0 = inlined_call_operand.vmem [shape: f32[32,64], index: 0, kind: input, shape index: {}]
  %s1 = inlined_call_operand.vmem [shape: f32[64,64], index: 1, kind: input, shape index: {}]
  %s2 = inlined_call_operand.vmem [shape: f32[1,64], index: 2, kind: input, shape index: {}]
  %s3 = inlined_call_operand.vmem [shape: f32[32,64], index: 3, kind: input, shape index: {}]
  %s4 = inlined_call_operand.vmem [shape: f32[32,64], index: 4, kind: output, shape index: {}]
  %s5 = sld [smem:[#allocation0]]
  $region34: #{_lambda_.13} parent=0
    _
  %s7 = ssub.s32 1, %s5
  %s8 = scalar_select 0, %s7, %s5
  // Predicated region
  $region2: #{_lambda_.13} parent=0 // pred_check
    _
  $region3: #{_lambda_.13} parent=0 // pred_check_branch
    %10 = sbr.rel (0) target = $region5
  $region4: #{_lambda_.13} parent=0 // pred_region
    _
  $region5: #{_lambda_.13} parent=0 // pred_fallthru
    _
  // Predicated region
  $region6: #{_lambda_.13} parent=0 // pred_check
    _
  $region7: #{_lambda_.13} parent=0 // pred_check_branch
    %12 = sbr.rel (0) target = $region9
  $region8: #{_lambda_.13} parent=0 // pred_region
    _
  $region9: #{_lambda_.13} parent=0 // pred_fallthru
    _
  // Predicated region
  $region10: #{_lambda_.13} parent=0 // pred_check
    _
  $region11: #{_lambda_.13} parent=0 // pred_check_branch
    %14 = sbr.rel (0) target = $region13
  $region12: #{_lambda_.13} parent=0 // pred_region
    _
  $region13: #{_lambda_.13} parent=0 // pred_fallthru
    _
  // Predicated region
  $region14: #{_lambda_.13} parent=0 // pred_check
    _
  $region15: #{_lambda_.13} parent=0 // pred_check_branch
    %16 = sbr.rel (0) target = $region17
  $region16: #{_lambda_.13} parent=0 // pred_region
    _
  $region17: #{_lambda_.13} parent=0 // pred_fallthru
    _
  %p18 = scmp.eq.s32.totalorder 0, 0
  // Predicated region
  $region18: #{_lambda_.13} parent=0 // pred_check
    %p19 = pneg %p18
  $region19: #{_lambda_.13} parent=0 // pred_check_branch
    %21 = sbr.rel (%p19) target = $region21
  $region20: #{_lambda_.13} parent=0 // pred_region
    %vm22 = vcmask 523264
    %23 = vst.msk [vmem:[#allocation2] sm:$0xff] %vm22, 0.0
    %24 = vst.msk [vmem:[#allocation2 + $0x8] sm:$0xff] %vm22, 0.0
    %25 = vst.msk [vmem:[#allocation2 + $0x10] sm:$0xff] %vm22, 0.0
    %26 = vst.msk [vmem:[#allocation2 + $0x18] sm:$0xff] %vm22, 0.0
  $region21: #{_lambda_.13} parent=0 // pred_fallthru
    _
  %v27 = vld [vmem:[#allocation2] sm:$0xff]
  %v28 = vld [vmem:[#allocation2 + $0x8] sm:$0xff]
  %v29 = vld [vmem:[#allocation2 + $0x10] sm:$0xff]
  %v30 = vld [vmem:[#allocation2 + $0x18] sm:$0xff]
  %v31 = vld [vmem:[%s0] sm:$0xff]
  %v32 = vld [vmem:[%s0 + $0x8] sm:$0xff]
  %v33 = vld [vmem:[%s0 + $0x10] sm:$0xff]
  %v34 = vld [vmem:[%s0 + $0x18] sm:$0xff]
  %v35 = vpack.c.bf16 %v32, %v31
  %v36 = vpack.c.bf16 %v34, %v33
  %v37 = vld [vmem:[%s1] sm:$0xff]
  %v38 = vld [vmem:[%s1 + $0x8] sm:$0xff]
  %v39 = vld [vmem:[%s1 + $0x10] sm:$0xff]
  %v40 = vld [vmem:[%s1 + $0x18] sm:$0xff]
  %v41 = vld [vmem:[%s1 + $0x20] sm:$0xff]
  %v42 = vld [vmem:[%s1 + $0x28] sm:$0xff]
  %v43 = vld [vmem:[%s1 + $0x30] sm:$0xff]
  %v44 = vld [vmem:[%s1 + $0x38] sm:$0xff]
  %v45 = vpack.c.bf16 %v38, %v37
  %v46 = vpack.c.bf16 %v40, %v39
  %v47 = vpack.c.bf16 %v42, %v41
  %v48 = vpack.c.bf16 %v44, %v43
  %vm49 = vcmask 523264
  %v51 = vsel %vm49, %v35, 0
  %v54 = vsel %vm49, %v36, 0
  %56 = vmatprep.subr.bf16.mxu0 0
  %57 = vmatpush1.bf16.msra.mxu0 %v45
  %58 = vmatprep.subr.bf16.mxu0 0
  %59 = vmatpush1.bf16.msra.mxu0 %v46
  %60 = vmatprep.subr.bf16.mxu0 0
  %61 = vmatpush1.bf16.msra.mxu0 %v47
  %62 = vmatprep.subr.bf16.mxu0 0
  %63 = vmatpush1.bf16.msra.mxu0 %v48
  %64 = vmatprep.subr.bf16.mxu0 0
  %65 = vmatpush1.bf16.msra.mxu0 0
  %66 = vmatprep.subr.bf16.mxu0 0
  %67 = vmatpush1.bf16.msra.mxu0 0
  %68 = vmatprep.subr.bf16.mxu0 0
  %69 = vmatpush1.bf16.msra.mxu0 0
  %70 = vmatprep.subr.bf16.mxu0 0
  %71 = vmatpush1.bf16.msra.mxu0 0
  %72 = vmatprep.subr.bf16.mxu0 0
  %73 = vmatpush1.bf16.msra.mxu0 0
  %74 = vmatprep.subr.bf16.mxu0 0
  %75 = vmatpush1.bf16.msra.mxu0 0
  %76 = vmatprep.subr.bf16.mxu0 0
  %77 = vmatpush1.bf16.msra.mxu0 0
  %78 = vmatprep.subr.bf16.mxu0 0
  %79 = vmatpush1.bf16.msra.mxu0 0
  %80 = vmatprep.subr.bf16.mxu0 0
  %81 = vmatpush1.bf16.msra.mxu0 0
  %82 = vmatprep.subr.bf16.mxu0 0
  %83 = vmatpush1.bf16.msra.mxu0 0
  %84 = vmatprep.subr.bf16.mxu0 0
  %85 = vmatpush1.bf16.msra.mxu0 0
  %86 = vmatprep.subr.bf16.mxu0 0
  %87 = vmatpush1.bf16.msra.mxu0 0
  %88 = vmatprep.mubr.bf16.mxu0 0
  %89 = vmatmul.mubr.bf16.gmra.mrb[0].mxu0 %v51
  %v90 = vpop.f32.mrb[0].mxu0
  %v91 = vadd.f32 0.0, %v90
  %v92 = vpop.f32.mrb[0].mxu0
  %v93 = vpop.f32.mrb[0].mxu0
  %v94 = vadd.f32 0.0, %v93
  %v95 = vpop.f32.mrb[0].mxu0
  %96 = vmatprep.mubr.bf16.mxu0 0
  %97 = vmatmul.mubr.bf16.gmra.mrb[0].mxu0 %v54
  %v98 = vpop.f32.mrb[0].mxu0
  %v99 = vadd.f32 0.0, %v98
  %v100 = vpop.f32.mrb[0].mxu0
  %v101 = vpop.f32.mrb[0].mxu0
  %v102 = vadd.f32 0.0, %v101
  %v103 = vpop.f32.mrb[0].mxu0
  %104 = vdwg.mxu0
  %v105 = vadd.f32 %v27, %v91
  %v106 = vadd.f32 %v28, %v94
  %v107 = vadd.f32 %v29, %v99
  %v108 = vadd.f32 %v30, %v102
  %109 = vst.msk [vmem:[#allocation2] sm:$0xff] %vm49, %v105
  %110 = vst.msk [vmem:[#allocation2 + $0x8] sm:$0xff] %vm49, %v106
  %111 = vst.msk [vmem:[#allocation2 + $0x10] sm:$0xff] %vm49, %v107
  %112 = vst.msk [vmem:[#allocation2 + $0x18] sm:$0xff] %vm49, %v108
  // Predicated region
  $region22: #{_lambda_.13} parent=0 // pred_check
    %p113 = pneg %p18
  $region23: #{_lambda_.13} parent=0 // pred_check_branch
    %115 = sbr.rel (%p113) target = $region25
  $region24: #{_lambda_.13} parent=0 // pred_region
    %v116 = vld [vmem:[#allocation2] sm:$0xff]
    %v117 = vld [vmem:[#allocation2 + $0x8] sm:$0xff]
    %v118 = vld [vmem:[#allocation2 + $0x10] sm:$0xff]
    %v119 = vld [vmem:[#allocation2 + $0x18] sm:$0xff]
    %v120 = vld [vmem:[%s2] sm:$0x1]
    %v122 = vlaneseq
    %v123 = vshrl.u32 %v122, 7
    %v124 = vsub.s32 0, %v123
    %v125 = vrot.slane %v120, %v124
    %v127 = vadd.f32 %v116, %v125
    %v128 = vadd.f32 %v117, %v125
    %v129 = vadd.f32 %v118, %v125
    %v130 = vadd.f32 %v119, %v125
    %v131 = vld [vmem:[%s3] sm:$0xff]
    %v132 = vld [vmem:[%s3 + $0x8] sm:$0xff]
    %v133 = vld [vmem:[%s3 + $0x10] sm:$0xff]
    %v134 = vld [vmem:[%s3 + $0x18] sm:$0xff]
    %v135 = vadd.f32 %v127, %v131
    %v136 = vadd.f32 %v128, %v132
    %v137 = vadd.f32 %v129, %v133
    %v138 = vadd.f32 %v130, %v134
    %139 = vst.msk [vmem:[%s4] sm:$0xff] %vm49, %v135
    %140 = vst.msk [vmem:[%s4 + $0x8] sm:$0xff] %vm49, %v136
    %141 = vst.msk [vmem:[%s4 + $0x10] sm:$0xff] %vm49, %v137
    %142 = vst.msk [vmem:[%s4 + $0x18] sm:$0xff] %vm49, %v138
  $region25: #{_lambda_.13} parent=0 // pred_fallthru
    _
  // Predicated region
  $region26: #{_lambda_.13} parent=0 // pred_check
    _
  $region27: #{_lambda_.13} parent=0 // pred_check_branch
    %144 = sbr.rel (0) target = $region29
  $region28: #{_lambda_.13} parent=0 // pred_region
    _
  $region29: #{_lambda_.13} parent=0 // pred_fallthru
    _
  // Predicated region
  $region30: #{_lambda_.13} parent=0 // pred_check
    _
  $region31: #{_lambda_.13} parent=0 // pred_check_branch
    %146 = sbr.rel (0) target = $region33
  $region32: #{_lambda_.13} parent=0 // pred_region
    _
  $region33: #{_lambda_.13} parent=0 // pred_fallthru
    _

// kernel: _lambda_.11
$region0: #{_lambda_.11}
  #allocation0 [shape = 'u32[]', space=smem, size = 0x4, offset = 0x4, fixed_abs, tag = 'smem constant byte address 0x4 - core index']
  #allocation1 [shape = 'u32[144,128]{1,0:T(1,128)}', space=vmem, size = 0x12000, scoped, tag = 'internal scratch']
  %s0 = inlined_call_operand.vmem [shape: f32[32,64], index: 0, kind: input, shape index: {}]
  %s1 = inlined_call_operand.vmem [shape: f32[1,64], index: 1, kind: input, shape index: {}]
  %s2 = inlined_call_operand.vmem [shape: f32[1,64], index: 2, kind: input, shape index: {}]
  %s3 = inlined_call_operand.vmem [shape: f32[64,192], index: 3, kind: input, shape index: {}]
  %s4 = inlined_call_operand.vmem [shape: f32[1,192], index: 4, kind: input, shape index: {}]
  %s5 = inlined_call_operand.vmem [shape: f32[32,192], index: 5, kind: output, shape index: {}]
  %s6 = sld [smem:[#allocation0]]
  $region30: #{_lambda_.11} parent=0
    _
  %s8 = ssub.s32 1, %s6
  %s9 = scalar_select 0, %s8, %s6
  // Predicated region
  $region2: #{_lambda_.11} parent=0 // pred_check
    _
  $region3: #{_lambda_.11} parent=0 // pred_check_branch
    %11 = sbr.rel (0) target = $region5
  $region4: #{_lambda_.11} parent=0 // pred_region
    _
  $region5: #{_lambda_.11} parent=0 // pred_fallthru
    _
  // Predicated region
  $region6: #{_lambda_.11} parent=0 // pred_check
    _
  $region7: #{_lambda_.11} parent=0 // pred_check_branch
    %13 = sbr.rel (0) target = $region9
  $region8: #{_lambda_.11} parent=0 // pred_region
    _
  $region9: #{_lambda_.11} parent=0 // pred_fallthru
    _
  // Predicated region
  $region10: #{_lambda_.11} parent=0 // pred_check
    _
  $region11: #{_lambda_.11} parent=0 // pred_check_branch
    %15 = sbr.rel (0) target = $region13
  $region12: #{_lambda_.11} parent=0 // pred_region
    _
  $region13: #{_lambda_.11} parent=0 // pred_fallthru
    _
  // Predicated region
  $region14: #{_lambda_.11} parent=0 // pred_check
    _
  $region15: #{_lambda_.11} parent=0 // pred_check_branch
    %17 = sbr.rel (0) target = $region17
  $region16: #{_lambda_.11} parent=0 // pred_region
    _
  $region17: #{_lambda_.11} parent=0 // pred_fallthru
    _
  // Predicated region
  $region18: #{_lambda_.11} parent=0 // pred_check
    _
  $region19: #{_lambda_.11} parent=0 // pred_check_branch
    %19 = sbr.rel (0) target = $region21
  $region20: #{_lambda_.11} parent=0 // pred_region
    _
  $region21: #{_lambda_.11} parent=0 // pred_fallthru
    _
  %v21 = vld [vmem:[%s0] sm:$0xff]
  %v22 = vld [vmem:[%s0 + $0x8] sm:$0xff]
  %v23 = vld [vmem:[%s0 + $0x10] sm:$0xff]
  %v24 = vld [vmem:[%s0 + $0x18] sm:$0xff]
  %vm25 = vcmask 523264
  %v26 = vsel %vm25, %v21, 0.0
  %27 = vadd.xlane.f32.xlu0 %v26
  %v28 = vpop.xlane.xlu0 %27
  %v29 = vsel %vm25, %v22, 0.0
  %30 = vadd.xlane.f32.xlu0 %v29
  %v31 = vpop.xlane.xlu0 %30
  %v32 = vsel %vm25, %v23, 0.0
  %33 = vadd.xlane.f32.xlu0 %v32
  %v34 = vpop.xlane.xlu0 %33
  %v35 = vsel %vm25, %v24, 0.0
  %36 = vadd.xlane.f32.xlu0 %v35
  %v37 = vpop.xlane.xlu0 %36
  %v38 = vrcp.pop 64.0
  %v39 = vmul.f32 %v28, %v38
  %v40 = vmul.f32 %v31, %v38
  %v41 = vmul.f32 %v34, %v38
  %v42 = vmul.f32 %v37, %v38
  %v43 = vsub.f32 %v21, %v39
  %v44 = vsub.f32 %v22, %v40
  %v45 = vsub.f32 %v23, %v41
  %v46 = vsub.f32 %v24, %v42
  %v47 = vmul.f32 %v43, %v43
  %v48 = vmul.f32 %v44, %v44
  %v49 = vmul.f32 %v45, %v45
  %v50 = vmul.f32 %v46, %v46
  %v51 = vsel %vm25, %v47, 0.0
  %52 = vadd.xlane.f32.xlu0 %v51
  %v53 = vpop.xlane.xlu0 %52
  %v54 = vsel %vm25, %v48, 0.0
  %55 = vadd.xlane.f32.xlu0 %v54
  %v56 = vpop.xlane.xlu0 %55
  %v57 = vsel %vm25, %v49, 0.0
  %58 = vadd.xlane.f32.xlu0 %v57
  %v59 = vpop.xlane.xlu0 %58
  %v60 = vsel %vm25, %v50, 0.0
  %61 = vadd.xlane.f32.xlu0 %v60
  %v62 = vpop.xlane.xlu0 %61
  %v63 = vmul.f32 %v53, %v38
  %v64 = vmul.f32 %v56, %v38
  %v65 = vmul.f32 %v59, %v38
  %v66 = vmul.f32 %v62, %v38
  %v67 = vadd.f32 %v63, 1e-05
  %v68 = vadd.f32 %v64, 1e-05
  %v69 = vadd.f32 %v65, 1e-05
  %v70 = vadd.f32 %v66, 1e-05
  %v71 = vrsqrt.pop %v67
  %v72 = vrsqrt.pop %v68
  %v73 = vrsqrt.pop %v69
  %v74 = vrsqrt.pop %v70
  %v75 = vmul.f32 %v43, %v71
  %v76 = vmul.f32 %v44, %v72
  %v77 = vmul.f32 %v45, %v73
  %v78 = vmul.f32 %v46, %v74
  %v79 = vld [vmem:[%s1] sm:$0x1]
  %v81 = vlaneseq
  %v82 = vshrl.u32 %v81, 7
  %v83 = vsub.s32 0, %v82
  %v84 = vrot.slane %v79, %v83
  %v86 = vmul.f32 %v75, %v84
  %v87 = vmul.f32 %v76, %v84
  %v88 = vmul.f32 %v77, %v84
  %v89 = vmul.f32 %v78, %v84
  %v90 = vld [vmem:[%s2] sm:$0x1]
  %v92 = vlaneseq
  %v93 = vshrl.u32 %v92, 7
  %v94 = vsub.s32 0, %v93
  %v95 = vrot.slane %v90, %v94
  %v97 = vadd.f32 %v86, %v95
  %v98 = vadd.f32 %v87, %v95
  %v99 = vadd.f32 %v88, %v95
  %v100 = vadd.f32 %v89, %v95
  %v101 = vpack.c.bf16 %v98, %v97
  %v102 = vpack.c.bf16 %v100, %v99
  %v103 = vld [vmem:[%s3] sm:$0xff]
  %v104 = vld [vmem:[%s3 + $0x8] sm:$0xff]
  %v105 = vld [vmem:[%s3 + $0x10] sm:$0xff]
  %v106 = vld [vmem:[%s3 + $0x18] sm:$0xff]
  %v107 = vld [vmem:[%s3 + $0x20] sm:$0xff]
  %v108 = vld [vmem:[%s3 + $0x28] sm:$0xff]
  %v109 = vld [vmem:[%s3 + $0x30] sm:$0xff]
  %v110 = vld [vmem:[%s3 + $0x38] sm:$0xff]
  %v111 = vld [vmem:[%s3 + $0x40] sm:$0xff]
  %v112 = vld [vmem:[%s3 + $0x48] sm:$0xff]
  %v113 = vld [vmem:[%s3 + $0x50] sm:$0xff]
  %v114 = vld [vmem:[%s3 + $0x58] sm:$0xff]
  %v115 = vld [vmem:[%s3 + $0x60] sm:$0xff]
  %v116 = vld [vmem:[%s3 + $0x68] sm:$0xff]
  %v117 = vld [vmem:[%s3 + $0x70] sm:$0xff]
  %v118 = vld [vmem:[%s3 + $0x78] sm:$0xff]
  %v119 = vpack.c.bf16 %v105, %v103
  %v120 = vpack.c.bf16 %v106, %v104
  %v121 = vpack.c.bf16 %v109, %v107
  %v122 = vpack.c.bf16 %v110, %v108
  %v123 = vpack.c.bf16 %v113, %v111
  %v124 = vpack.c.bf16 %v114, %v112
  %v125 = vpack.c.bf16 %v117, %v115
  %v126 = vpack.c.bf16 %v118, %v116
  %v127 = vld [vmem:[%s4] sm:$0x3]
  %v129 = vlaneseq
  %v130 = vshrl.u32 %v129, 7
  %v131 = vsub.s32 0, %v130
  %v132 = vrot.slane %v127, %v131
  %v133 = vlaneseq
  %v134 = vshrl.u32 %v133, 7
  %v135 = vsub.s32 1, %v134
  %v136 = vrot.slane %v127, %v135
  %v140 = vsel %vm25, %v101, 0
  %v143 = vsel %vm25, %v102, 0
  %145 = vmatprep.subr.bf16.mxu0 %v120
  %146 = vmatpush1.bf16.msra.mxu0 %v119
  %147 = vmatprep.subr.bf16.mxu0 %v122
  %148 = vmatpush1.bf16.msra.mxu0 %v121
  %149 = vmatprep.subr.bf16.mxu0 %v124
  %150 = vmatpush1.bf16.msra.mxu0 %v123
  %151 = vmatprep.subr.bf16.mxu0 %v126
  %152 = vmatpush1.bf16.msra.mxu0 %v125
  %153 = vmatprep.subr.bf16.mxu0 0
  %154 = vmatpush1.bf16.msra.mxu0 0
  %155 = vmatprep.subr.bf16.mxu0 0
  %156 = vmatpush1.bf16.msra.mxu0 0
  %157 = vmatprep.subr.bf16.mxu0 0
  %158 = vmatpush1.bf16.msra.mxu0 0
  %159 = vmatprep.subr.bf16.mxu0 0
  %160 = vmatpush1.bf16.msra.mxu0 0
  %161 = vmatprep.subr.bf16.mxu0 0
  %162 = vmatpush1.bf16.msra.mxu0 0
  %163 = vmatprep.subr.bf16.mxu0 0
  %164 = vmatpush1.bf16.msra.mxu0 0
  %165 = vmatprep.subr.bf16.mxu0 0
  %166 = vmatpush1.bf16.msra.mxu0 0
  %167 = vmatprep.subr.bf16.mxu0 0
  %168 = vmatpush1.bf16.msra.mxu0 0
  %169 = vmatprep.subr.bf16.mxu0 0
  %170 = vmatpush1.bf16.msra.mxu0 0
  %171 = vmatprep.subr.bf16.mxu0 0
  %172 = vmatpush1.bf16.msra.mxu0 0
  %173 = vmatprep.subr.bf16.mxu0 0
  %174 = vmatpush1.bf16.msra.mxu0 0
  %175 = vmatprep.subr.bf16.mxu0 0
  %176 = vmatpush1.bf16.msra.mxu0 0
  %177 = vmatprep.mubr.bf16.mxu0 0
  %178 = vmatmul.mubr.bf16.gmra.mrb[0].mxu0 %v140
  %v179 = vpop.f32.mrb[0].mxu0
  %v180 = vadd.f32 %v132, %v179
  %v181 = vpop.f32.mrb[0].mxu0
  %v182 = vadd.f32 %v136, %v181
  %v183 = vpop.f32.mrb[0].mxu0
  %v184 = vadd.f32 %v132, %v183
  %v185 = vpop.f32.mrb[0].mxu0
  %v186 = vadd.f32 %v136, %v185
  %187 = vmatprep.mubr.bf16.mxu0 0
  %188 = vmatmul.mubr.bf16.gmra.mrb[0].mxu0 %v143
  %v189 = vpop.f32.mrb[0].mxu0
  %v190 = vadd.f32 %v132, %v189
  %v191 = vpop.f32.mrb[0].mxu0
  %v192 = vadd.f32 %v136, %v191
  %v193 = vpop.f32.mrb[0].mxu0
  %v194 = vadd.f32 %v132, %v193
  %v195 = vpop.f32.mrb[0].mxu0
  %v196 = vadd.f32 %v136, %v195
  %197 = vdwg.mxu0
  %198 = vst [vmem:[%s5] sm:$0xff] %v180
  %199 = vst.msk [vmem:[%s5 + $0x8] sm:$0xff] %vm25, %v182
  %200 = vst [vmem:[%s5 + $0x10] sm:$0xff] %v184
  %201 = vst.msk [vmem:[%s5 + $0x18] sm:$0xff] %vm25, %v186
  %202 = vst [vmem:[%s5 + $0x20] sm:$0xff] %v190
  %203 = vst.msk [vmem:[%s5 + $0x28] sm:$0xff] %vm25, %v192
  %204 = vst [vmem:[%s5 + $0x30] sm:$0xff] %v194
  %205 = vst.msk [vmem:[%s5 + $0x38] sm:$0xff] %vm25, %v196
  // Predicated region
  $region22: #{_lambda_.11} parent=0 // pred_check
    _
  $region23: #{_lambda_.11} parent=0 // pred_check_branch
    %207 = sbr.rel (0) target = $region25
  $region24: #{_lambda_.11} parent=0 // pred_region
    _
  $region25: #{_lambda_.11} parent=0 // pred_fallthru
    _
  // Predicated region
  $region26: #{_lambda_.11} parent=0 // pred_check
    _
  $region27: #{_lambda_.11} parent=0 // pred_check_branch
    %209 = sbr.rel (0) target = $region29
  $region28: #{_lambda_.11} parent=0 // pred_region
    _
  $region29: #{_lambda_.11} parent=0 // pred_fallthru
    _

// kernel: _lambda_.12
$region0: #{_lambda_.12}
  #allocation0 [shape = 'u32[]', space=smem, size = 0x4, offset = 0x4, fixed_abs, tag = 'smem constant byte address 0x4 - core index']
  #allocation1 [shape = 'u32[144,128]{1,0:T(1,128)}', space=vmem, size = 0x12000, scoped, tag = 'internal scratch']
  %s0 = inlined_call_operand.vmem [shape: f32[2,16,192], index: 0, kind: input, shape index: {}]
  %s1 = inlined_call_operand.vmem [shape: f32[2,16,64], index: 1, kind: output, shape index: {}]
  %s2 = sld [smem:[#allocation0]]
  $region37: #{_lambda_.12} parent=0
    _
  %s4 = ssub.s32 1, %s2
  %s5 = scalar_select 0, %s4, %s2
  loop: start=0, step=1, limit=4
  $region2: #{_lambda_.12} parent=0 // loop_pre_header
    _
  $region3: #{_lambda_.12} parent=0 // loop_header
    %s7 = sphi 0, %s11
    %p8 = scmp.ge.s32.totalorder %s7, 4
    %s17 = sphi 0, %s19
    %s20 = sphi 0, %s17
    %s21 = sphi 0, %s20
    %s37 = sphi 0, %s21
    %s43 = sphi 0, %s45
    %s46 = sphi 0, %s43
    %s47 = sphi 0, %s46
    %s63 = sphi 0, %s47
  $region4: #{_lambda_.12} parent=0 // loop_header_branch
    %10 = sbr.rel (%p8) target = $region8
  $region5: #{_lambda_.12} parent=0 // loop_body
    %s12 = ssub.s32 %s7, 1
    %s13 = ssub.s32 %s7, 2
    %s14 = sadd.s32 %s7, 1
    %s15 = ssub.s32 %s7, %s14
    %p16 = scmp.eq.s32.totalorder %s15, 0
    %s18 = sadd.s32 %s17, 1
    %s19 = scalar_select %p16, %s17, %s18
    %p22 = pneg %p16
    %p23 = scmp.eq.s32.totalorder %s7, 1
    %p24 = por %p22, %p23
    %p25 = scmp.ne.s32.totalorder %s17, %s20
    %p26 = scmp.eq.s32.totalorder %s7, 0
    %p27 = por %p25, %p26
    %p28 = scmp.ne.s32.totalorder %s17, %s20
    %p29 = scmp.eq.s32.totalorder %s12, 1
    %p30 = por %p28, %p29
    %p31 = scmp.ne.s32.totalorder %s20, %s21
    %p32 = scmp.eq.s32.totalorder %s12, 0
    %p33 = por %p31, %p32
    %p34 = scmp.ne.s32.totalorder %s20, %s21
    %p35 = scmp.eq.s32.totalorder %s13, 1
    %p36 = por %p34, %p35
    %p38 = scmp.ne.s32.totalorder %s21, %s37
    %p39 = scmp.eq.s32.totalorder %s13, 0
    %p40 = por %p38, %p39
    %s41 = ssub.s32 %s7, %s14
    %p42 = scmp.eq.s32.totalorder %s41, 0
    %s44 = sadd.s32 %s43, 1
    %s45 = scalar_select %p42, %s43, %s44
    %p48 = pneg %p42
    %p49 = scmp.eq.s32.totalorder %s7, 1
    %p50 = por %p48, %p49
    %p51 = scmp.ne.s32.totalorder %s43, %s46
    %p52 = scmp.eq.s32.totalorder %s7, 0
    %p53 = por %p51, %p52
    %p54 = scmp.ne.s32.totalorder %s43, %s46
    %p55 = scmp.eq.s32.totalorder %s12, 1
    %p56 = por %p54, %p55
    %p57 = scmp.ne.s32.totalorder %s46, %s47
    %p58 = scmp.eq.s32.totalorder %s12, 0
    %p59 = por %p57, %p58
    %p60 = scmp.ne.s32.totalorder %s46, %s47
    %p61 = scmp.eq.s32.totalorder %s13, 1
    %p62 = por %p60, %p61
    %p64 = scmp.ne.s32.totalorder %s47, %s63
    %p65 = scmp.eq.s32.totalorder %s13, 0
    %p66 = por %p64, %p65
    %p67 = scmp.le.s32.totalorder 1, %s7
    %p68 = scmp.lt.s32.totalorder %s7, 3
    %p69 = pnand %p67, %p68
    %p70 = pneg %p69
    // Predicated region
    $region9: #{_lambda_.12} parent=5 // pred_check
      _
    $region10: #{_lambda_.12} parent=5 // pred_check_branch
      %72 = sbr.rel (%p69) target = $region12
    $region11: #{_lambda_.12} parent=5 // pred_region
      %s73 = ssub.s32 %s7, 1
    $region12: #{_lambda_.12} parent=5 // pred_fallthru
      _
    %p74 = scmp.lt.s32.totalorder %s7, 2
    // Predicated region
    $region13: #{_lambda_.12} parent=5 // pred_check
      %p75 = pneg %p74
    $region14: #{_lambda_.12} parent=5 // pred_check_branch
      %77 = sbr.rel (%p75) target = $region16
    $region15: #{_lambda_.12} parent=5 // pred_region
      // Predicated region
      $region17: #{_lambda_.12} parent=15 // pred_check
        %p78 = pneg %p27
      $region18: #{_lambda_.12} parent=15 // pred_check_branch
        %80 = sbr.rel (%p78) target = $region20
      $region19: #{_lambda_.12} parent=15 // pred_region
        %p81 = scmp.lt.s32.totalorder %s7, 1
        %s82 = scalar_select %p81, %s7, 1
        %s83 = smul.addr %s82, 4
        %s84 = smul.addr %s83, 8
        %s85 = scalar_lea.vmem %s0, %s84
      $region20: #{_lambda_.12} parent=15 // pred_fallthru
        _
    $region16: #{_lambda_.12} parent=5 // pred_fallthru
      _
    %p86 = scmp.le.s32.totalorder 1, %s7
    %p87 = scmp.lt.s32.totalorder %s7, 3
    %p88 = pnand %p86, %p87
    %p89 = pneg %p88
    // Predicated region
    $region21: #{_lambda_.12} parent=5 // pred_check
      _
    $region22: #{_lambda_.12} parent=5 // pred_check_branch
      %91 = sbr.rel (%p88) target = $region24
    $region23: #{_lambda_.12} parent=5 // pred_region
      %s92 = ssub.s32 %s7, 1
      %p93 = scmp.lt.s32.totalorder %s12, 1
      %s94 = scalar_select %p93, %s12, 1
      %s95 = smul.addr %s94, 4
      %s96 = smul.addr %s95, 8
      %s97 = scalar_lea.vmem %s0, %s96
      %p98 = pneg %p33
      %p99 = pneg %p30
      %p100 = pneg %p59
      %p101 = pneg %p56
      %p102 = scmp.lt.s32.totalorder %s12, 1
      %s103 = scalar_select %p102, %s12, 1
      %s104 = smul.addr %s103, 2
      %s105 = smul.addr %s104, 8
      %s106 = scalar_lea.vmem %s1, %s105
      %p107 = scmp.lt.s32.totalorder %s12, 1
      %s108 = scalar_select %p107, %s12, 1
      %s109 = smul.addr %s108, 4
      %s110 = smul.addr %s109, 8
      %s111 = scalar_lea.vmem %s0, %s110
      %p112 = scmp.lt.s32.totalorder %s12, 1
      %s113 = scalar_select %p112, %s12, 1
      %s114 = smul.addr %s113, 2
      %s115 = smul.addr %s114, 8
      %s116 = scalar_lea.vmem %s1, %s115
      %v118 = vld [vmem:[%s111] sm:$0xff]
      %v119 = vld [vmem:[%s111 + $0x8] sm:$0xff]
      %v120 = vld [vmem:[%s111 + $0x10] sm:$0xff]
      %v121 = vld [vmem:[%s111 + $0x18] sm:$0xff]
      %v122 = vlaneseq
      %v123 = vshrl.u32 %v122, 7
      %v124 = vadd.s32 %v123, 8
      %v125 = vlaneseq
      %v126 = vand.u32 %v125, 127
      %vm127 = vcmp.le.s32.totalorder %v126, %v123
      %vm128 = vcmp.le.s32.totalorder %v126, %v124
      %v129 = vpack.c.bf16 %v120, %v118
      %v130 = vpack.c.bf16 %v121, %v119
      %132 = vrot.lane.b32.xlu0 %v129, 64
      %v133 = vpop.permute.xlu0 %132
      %vm134 = vcmask 130048
      %v136 = vsel %vm134, %v129, 0
      %v139 = vsel %vm134, %v133, 0
      %141 = vmatprep.subr.bf16.mxu0 0
      %142 = vmatpush1.bf16.xpose.msra.mxu0 %v139
      %143 = vmatprep.subr.bf16.mxu0 0
      %144 = vmatpush1.bf16.xpose.msra.mxu0 0
      %145 = vmatprep.subr.bf16.mxu0 0
      %146 = vmatpush1.bf16.xpose.msra.mxu0 0
      %147 = vmatprep.subr.bf16.mxu0 0
      %148 = vmatpush1.bf16.xpose.msra.mxu0 0
      %149 = vmatprep.subr.bf16.mxu0 0
      %150 = vmatpush1.bf16.xpose.msra.mxu0 0
      %151 = vmatprep.subr.bf16.mxu0 0
      %152 = vmatpush1.bf16.xpose.msra.mxu0 0
      %153 = vmatprep.subr.bf16.mxu0 0
      %154 = vmatpush1.bf16.xpose.msra.mxu0 0
      %155 = vmatprep.subr.bf16.mxu0 0
      %156 = vmatpush1.bf16.xpose.msra.mxu0 0
      %157 = vmatprep.subr.bf16.mxu0 0
      %158 = vmatpush1.bf16.xpose.msra.mxu0 0
      %159 = vmatprep.subr.bf16.mxu0 0
      %160 = vmatpush1.bf16.xpose.msra.mxu0 0
      %161 = vmatprep.subr.bf16.mxu0 0
      %162 = vmatpush1.bf16.xpose.msra.mxu0 0
      %163 = vmatprep.subr.bf16.mxu0 0
      %164 = vmatpush1.bf16.xpose.msra.mxu0 0
      %165 = vmatprep.subr.bf16.mxu0 0
      %166 = vmatpush1.bf16.xpose.msra.mxu0 0
      %167 = vmatprep.subr.bf16.mxu0 0
      %168 = vmatpush1.bf16.xpose.msra.mxu0 0
      %169 = vmatprep.subr.bf16.mxu0 0
      %170 = vmatpush1.bf16.xpose.msra.mxu0 0
      %171 = vmatprep.subr.bf16.mxu0 0
      %172 = vmatpush1.bf16.xpose.msra.mxu0 0
      %173 = vmatprep.mubr.bf16.mxu0 0
      %174 = vmatmul.mubr.bf16.gmra.mrb[0].mxu0 %v136
      %v175 = vpop.f32.mrb[0].mxu0
      %v176 = vadd.f32 0.0, %v175
      %v177 = vpop.f32.mrb[0].mxu0
      %v178 = vpop.f32.mrb[0].mxu0
      %v179 = vadd.f32 0.0, %v178
      %v180 = vpop.f32.mrb[0].mxu0
      %181 = vdwg.mxu0
      %v182 = vmul.f32 %v176, 0.25
      %v183 = vmul.f32 %v179, 0.25
      %v184 = vsel %vm127, %v182, -inf
      %v185 = vsel %vm128, %v183, -inf
      %v186 = vsel %vm134, %v184, -inf
      %187 = vmax.xlane.f32.xlu0 %v186
      %v188 = vpop.xlane.xlu0 %187
      %v189 = vsel %vm134, %v185, -inf
      %190 = vmax.xlane.f32.xlu0 %v189
      %v191 = vpop.xlane.xlu0 %190
      %v192 = vsub.f32 %v184, %v188
      %v193 = vsub.f32 %v185, %v191
      %v194 = vmul.f32 %v192, 1.442695
      %v195 = vpow.pop %v194
      %v196 = vmul.f32 %v193, 1.442695
      %v197 = vpow.pop %v196
      %v198 = vsel %vm134, %v195, 0.0
      %199 = vadd.xlane.f32.xlu0 %v198
      %v200 = vpop.xlane.xlu0 %199
      %v201 = vsel %vm134, %v197, 0.0
      %202 = vadd.xlane.f32.xlu0 %v201
      %v203 = vpop.xlane.xlu0 %202
      %v204 = vrcp.pop %v200
      %v205 = vrcp.pop %v203
      %v206 = vmul.f32 %v195, %v204
      %v207 = vmul.f32 %v197, %v205
      %v208 = vpack.c.bf16 %v207, %v206
      %v210 = vsel %vm134, %v208, 0
      %212 = vmatprep.subr.bf16.mxu0 0
      %213 = vmatpush1.bf16.msra.mxu0 %v130
      %214 = vmatprep.subr.bf16.mxu0 0
      %215 = vmatpush1.bf16.msra.mxu0 0
      %216 = vmatprep.subr.bf16.mxu0 0
      %217 = vmatpush1.bf16.msra.mxu0 0
      %218 = vmatprep.subr.bf16.mxu0 0
      %219 = vmatpush1.bf16.msra.mxu0 0
      %220 = vmatprep.subr.bf16.mxu0 0
      %221 = vmatpush1.bf16.msra.mxu0 0
      %222 = vmatprep.subr.bf16.mxu0 0
      %223 = vmatpush1.bf16.msra.mxu0 0
      %224 = vmatprep.subr.bf16.mxu0 0
      %225 = vmatpush1.bf16.msra.mxu0 0
      %226 = vmatprep.subr.bf16.mxu0 0
      %227 = vmatpush1.bf16.msra.mxu0 0
      %228 = vmatprep.subr.bf16.mxu0 0
      %229 = vmatpush1.bf16.msra.mxu0 0
      %230 = vmatprep.subr.bf16.mxu0 0
      %231 = vmatpush1.bf16.msra.mxu0 0
      %232 = vmatprep.subr.bf16.mxu0 0
      %233 = vmatpush1.bf16.msra.mxu0 0
      %234 = vmatprep.subr.bf16.mxu0 0
      %235 = vmatpush1.bf16.msra.mxu0 0
      %236 = vmatprep.subr.bf16.mxu0 0
      %237 = vmatpush1.bf16.msra.mxu0 0
      %238 = vmatprep.subr.bf16.mxu0 0
      %239 = vmatpush1.bf16.msra.mxu0 0
      %240 = vmatprep.subr.bf16.mxu0 0
      %241 = vmatpush1.bf16.msra.mxu0 0
      %242 = vmatprep.subr.bf16.mxu0 0
      %243 = vmatpush1.bf16.msra.mxu0 0
      %244 = vmatprep.mubr.bf16.mxu0 0
      %245 = vmatmul.mubr.bf16.gmra.mrb[0].mxu0 %v210
      %v246 = vpop.f32.mrb[0].mxu0
      %v247 = vadd.f32 0.0, %v246
      %v248 = vpop.f32.mrb[0].mxu0
      %v249 = vpop.f32.mrb[0].mxu0
      %v250 = vadd.f32 0.0, %v249
      %v251 = vpop.f32.mrb[0].mxu0
      %252 = vdwg.mxu0
      %253 = vrot.lane.b32.xlu0 %v129, 112
      %v254 = vpop.permute.xlu0 %253
      %255 = vrot.lane.b32.xlu0 %v129, 48
      %v256 = vpop.permute.xlu0 %255
      %v258 = vsel %vm134, %v254, 0
      %v261 = vsel %vm134, %v256, 0
      %263 = vmatprep.subr.bf16.mxu0 0
      %264 = vmatpush1.bf16.xpose.msra.mxu0 %v261
      %265 = vmatprep.subr.bf16.mxu0 0
      %266 = vmatpush1.bf16.xpose.msra.mxu0 0
      %267 = vmatprep.subr.bf16.mxu0 0
      %268 = vmatpush1.bf16.xpose.msra.mxu0 0
      %269 = vmatprep.subr.bf16.mxu0 0
      %270 = vmatpush1.bf16.xpose.msra.mxu0 0
      %271 = vmatprep.subr.bf16.mxu0 0
      %272 = vmatpush1.bf16.xpose.msra.mxu0 0
      %273 = vmatprep.subr.bf16.mxu0 0
      %274 = vmatpush1.bf16.xpose.msra.mxu0 0
      %275 = vmatprep.subr.bf16.mxu0 0
      %276 = vmatpush1.bf16.xpose.msra.mxu0 0
      %277 = vmatprep.subr.bf16.mxu0 0
      %278 = vmatpush1.bf16.xpose.msra.mxu0 0
      %279 = vmatprep.subr.bf16.mxu0 0
      %280 = vmatpush1.bf16.xpose.msra.mxu0 0
      %281 = vmatprep.subr.bf16.mxu0 0
      %282 = vmatpush1.bf16.xpose.msra.mxu0 0
      %283 = vmatprep.subr.bf16.mxu0 0
      %284 = vmatpush1.bf16.xpose.msra.mxu0 0
      %285 = vmatprep.subr.bf16.mxu0 0
      %286 = vmatpush1.bf16.xpose.msra.mxu0 0
      %287 = vmatprep.subr.bf16.mxu0 0
      %288 = vmatpush1.bf16.xpose.msra.mxu0 0
      %289 = vmatprep.subr.bf16.mxu0 0
      %290 = vmatpush1.bf16.xpose.msra.mxu0 0
      %291 = vmatprep.subr.bf16.mxu0 0
      %292 = vmatpush1.bf16.xpose.msra.mxu0 0
      %293 = vmatprep.subr.bf16.mxu0 0
      %294 = vmatpush1.bf16.xpose.msra.mxu0 0
      %295 = vmatprep.mubr.bf16.mxu0 0
      %296 = vmatmul.mubr.bf16.gmra.mrb[0].mxu0 %v258
      %v297 = vpop.f32.mrb[0].mxu0
      %v298 = vadd.f32 0.0, %v297
      %v299 = vpop.f32.mrb[0].mxu0
      %v300 = vpop.f32.mrb[0].mxu0
      %v301 = vadd.f32 0.0, %v300
      %v302 = vpop.f32.mrb[0].mxu0
      %303 = vdwg.mxu0
      %v304 = vmul.f32 %v298, 0.25
      %v305 = vmul.f32 %v301, 0.25
      %v306 = vsel %vm127, %v304, -inf
      %v307 = vsel %vm128, %v305, -inf
      %v308 = vsel %vm134, %v306, -inf
      %309 = vmax.xlane.f32.xlu0 %v308
      %v310 = vpop.xlane.xlu0 %309
      %v311 = vsel %vm134, %v307, -inf
      %312 = vmax.xlane.f32.xlu0 %v311
      %v313 = vpop.xlane.xlu0 %312
      %v314 = vsub.f32 %v306, %v310
      %v315 = vsub.f32 %v307, %v313
      %v316 = vmul.f32 %v314, 1.442695
      %v317 = vpow.pop %v316
      %v318 = vmul.f32 %v315, 1.442695
      %v319 = vpow.pop %v318
      %v320 = vsel %vm134, %v317, 0.0
      %321 = vadd.xlane.f32.xlu0 %v320
      %v322 = vpop.xlane.xlu0 %321
      %v323 = vsel %vm134, %v319, 0.0
      %324 = vadd.xlane.f32.xlu0 %v323
      %v325 = vpop.xlane.xlu0 %324
      %v326 = vrcp.pop %v322
      %v327 = vrcp.pop %v325
      %v328 = vmul.f32 %v317, %v326
      %v329 = vmul.f32 %v319, %v327
      %v330 = vpack.c.bf16 %v329, %v328
      %332 = vrot.lane.b32.xlu0 %v130, 112
      %v333 = vpop.permute.xlu0 %332
      %v336 = vsel %vm134, %v330, 0
      %338 = vmatprep.subr.bf16.mxu0 0
      %339 = vmatpush1.bf16.msra.mxu0 %v333
      %340 = vmatprep.subr.bf16.mxu0 0
      %341 = vmatpush1.bf16.msra.mxu0 0
      %342 = vmatprep.subr.bf16.mxu0 0
      %343 = vmatpush1.bf16.msra.mxu0 0
      %344 = vmatprep.subr.bf16.mxu0 0
      %345 = vmatpush1.bf16.msra.mxu0 0
      %346 = vmatprep.subr.bf16.mxu0 0
      %347 = vmatpush1.bf16.msra.mxu0 0
      %348 = vmatprep.subr.bf16.mxu0 0
      %349 = vmatpush1.bf16.msra.mxu0 0
      %350 = vmatprep.subr.bf16.mxu0 0
      %351 = vmatpush1.bf16.msra.mxu0 0
      %352 = vmatprep.subr.bf16.mxu0 0
      %353 = vmatpush1.bf16.msra.mxu0 0
      %354 = vmatprep.subr.bf16.mxu0 0
      %355 = vmatpush1.bf16.msra.mxu0 0
      %356 = vmatprep.subr.bf16.mxu0 0
      %357 = vmatpush1.bf16.msra.mxu0 0
      %358 = vmatprep.subr.bf16.mxu0 0
      %359 = vmatpush1.bf16.msra.mxu0 0
      %360 = vmatprep.subr.bf16.mxu0 0
      %361 = vmatpush1.bf16.msra.mxu0 0
      %362 = vmatprep.subr.bf16.mxu0 0
      %363 = vmatpush1.bf16.msra.mxu0 0
      %364 = vmatprep.subr.bf16.mxu0 0
      %365 = vmatpush1.bf16.msra.mxu0 0
      %366 = vmatprep.subr.bf16.mxu0 0
      %367 = vmatpush1.bf16.msra.mxu0 0
      %368 = vmatprep.subr.bf16.mxu0 0
      %369 = vmatpush1.bf16.msra.mxu0 0
      %370 = vmatprep.mubr.bf16.mxu0 0
      %371 = vmatmul.mubr.bf16.gmra.mrb[0].mxu0 %v336
      %v372 = vpop.f32.mrb[0].mxu0
      %v373 = vadd.f32 0.0, %v372
      %v374 = vpop.f32.mrb[0].mxu0
      %v375 = vpop.f32.mrb[0].mxu0
      %v376 = vadd.f32 0.0, %v375
      %v377 = vpop.f32.mrb[0].mxu0
      %378 = vdwg.mxu0
      %379 = vrot.lane.b32.xlu0 %v129, 96
      %v380 = vpop.permute.xlu0 %379
      %381 = vrot.lane.b32.xlu0 %v129, 32
      %v382 = vpop.permute.xlu0 %381
      %v384 = vsel %vm134, %v380, 0
      %v387 = vsel %vm134, %v382, 0
      %389 = vmatprep.subr.bf16.mxu0 0
      %390 = vmatpush1.bf16.xpose.msra.mxu0 %v387
      %391 = vmatprep.subr.bf16.mxu0 0
      %392 = vmatpush1.bf16.xpose.msra.mxu0 0
      %393 = vmatprep.subr.bf16.mxu0 0
      %394 = vmatpush1.bf16.xpose.msra.mxu0 0
      %395 = vmatprep.subr.bf16.mxu0 0
      %396 = vmatpush1.bf16.xpose.msra.mxu0 0
      %397 = vmatprep.subr.bf16.mxu0 0
      %398 = vmatpush1.bf16.xpose.msra.mxu0 0
      %399 = vmatprep.subr.bf16.mxu0 0
      %400 = vmatpush1.bf16.xpose.msra.mxu0 0
      %401 = vmatprep.subr.bf16.mxu0 0
      %402 = vmatpush1.bf16.xpose.msra.mxu0 0
      %403 = vmatprep.subr.bf16.mxu0 0
      %404 = vmatpush1.bf16.xpose.msra.mxu0 0
      %405 = vmatprep.subr.bf16.mxu0 0
      %406 = vmatpush1.bf16.xpose.msra.mxu0 0
      %407 = vmatprep.subr.bf16.mxu0 0
      %408 = vmatpush1.bf16.xpose.msra.mxu0 0
      %409 = vmatprep.subr.bf16.mxu0 0
      %410 = vmatpush1.bf16.xpose.msra.mxu0 0
      %411 = vmatprep.subr.bf16.mxu0 0
      %412 = vmatpush1.bf16.xpose.msra.mxu0 0
      %413 = vmatprep.subr.bf16.mxu0 0
      %414 = vmatpush1.bf16.xpose.msra.mxu0 0
      %415 = vmatprep.subr.bf16.mxu0 0
      %416 = vmatpush1.bf16.xpose.msra.mxu0 0
      %417 = vmatprep.subr.bf16.mxu0 0
      %418 = vmatpush1.bf16.xpose.msra.mxu0 0
      %419 = vmatprep.subr.bf16.mxu0 0
      %420 = vmatpush1.bf16.xpose.msra.mxu0 0
      %421 = vmatprep.mubr.bf16.mxu0 0
      %422 = vmatmul.mubr.bf16.gmra.mrb[0].mxu0 %v384
      %v423 = vpop.f32.mrb[0].mxu0
      %v424 = vadd.f32 0.0, %v423
      %v425 = vpop.f32.mrb[0].mxu0
      %v426 = vpop.f32.mrb[0].mxu0
      %v427 = vadd.f32 0.0, %v426
      %v428 = vpop.f32.mrb[0].mxu0
      %429 = vdwg.mxu0
      %v430 = vmul.f32 %v424, 0.25
      %v431 = vmul.f32 %v427, 0.25
      %v432 = vsel %vm127, %v430, -inf
      %v433 = vsel %vm128, %v431, -inf
      %v434 = vsel %vm134, %v432, -inf
      %435 = vmax.xlane.f32.xlu0 %v434
      %v436 = vpop.xlane.xlu0 %435
      %v437 = vsel %vm134, %v433, -inf
      %438 = vmax.xlane.f32.xlu0 %v437
      %v439 = vpop.xlane.xlu0 %438
      %v440 = vsub.f32 %v432, %v436
      %v441 = vsub.f32 %v433, %v439
      %v442 = vmul.f32 %v440, 1.442695
      %v443 = vpow.pop %v442
      %v444 = vmul.f32 %v441, 1.442695
      %v445 = vpow.pop %v444
      %v446 = vsel %vm134, %v443, 0.0
      %447 = vadd.xlane.f32.xlu0 %v446
      %v448 = vpop.xlane.xlu0 %447
      %v449 = vsel %vm134, %v445, 0.0
      %450 = vadd.xlane.f32.xlu0 %v449
      %v451 = vpop.xlane.xlu0 %450
      %v452 = vrcp.pop %v448
      %v453 = vrcp.pop %v451
      %v454 = vmul.f32 %v443, %v452
      %v455 = vmul.f32 %v445, %v453
      %v456 = vpack.c.bf16 %v455, %v454
      %457 = vrot.lane.b32.xlu0 %v130, 96
      %v458 = vpop.permute.xlu0 %457
      %v461 = vsel %vm134, %v456, 0
      %463 = vmatprep.subr.bf16.mxu0 0
      %464 = vmatpush1.bf16.msra.mxu0 %v458
      %465 = vmatprep.subr.bf16.mxu0 0
      %466 = vmatpush1.bf16.msra.mxu0 0
      %467 = vmatprep.subr.bf16.mxu0 0
      %468 = vmatpush1.bf16.msra.mxu0 0
      %469 = vmatprep.subr.bf16.mxu0 0
      %470 = vmatpush1.bf16.msra.mxu0 0
      %471 = vmatprep.subr.bf16.mxu0 0
      %472 = vmatpush1.bf16.msra.mxu0 0
      %473 = vmatprep.subr.bf16.mxu0 0
      %474 = vmatpush1.bf16.msra.mxu0 0
      %475 = vmatprep.subr.bf16.mxu0 0
      %476 = vmatpush1.bf16.msra.mxu0 0
      %477 = vmatprep.subr.bf16.mxu0 0
      %478 = vmatpush1.bf16.msra.mxu0 0
      %479 = vmatprep.subr.bf16.mxu0 0
      %480 = vmatpush1.bf16.msra.mxu0 0
      %481 = vmatprep.subr.bf16.mxu0 0
      %482 = vmatpush1.bf16.msra.mxu0 0
      %483 = vmatprep.subr.bf16.mxu0 0
      %484 = vmatpush1.bf16.msra.mxu0 0
      %485 = vmatprep.subr.bf16.mxu0 0
      %486 = vmatpush1.bf16.msra.mxu0 0
      %487 = vmatprep.subr.bf16.mxu0 0
      %488 = vmatpush1.bf16.msra.mxu0 0
      %489 = vmatprep.subr.bf16.mxu0 0
      %490 = vmatpush1.bf16.msra.mxu0 0
      %491 = vmatprep.subr.bf16.mxu0 0
      %492 = vmatpush1.bf16.msra.mxu0 0
      %493 = vmatprep.subr.bf16.mxu0 0
      %494 = vmatpush1.bf16.msra.mxu0 0
      %495 = vmatprep.mubr.bf16.mxu0 0
      %496 = vmatmul.mubr.bf16.gmra.mrb[0].mxu0 %v461
      %v497 = vpop.f32.mrb[0].mxu0
      %v498 = vadd.f32 0.0, %v497
      %v499 = vpop.f32.mrb[0].mxu0
      %v500 = vpop.f32.mrb[0].mxu0
      %v501 = vadd.f32 0.0, %v500
      %v502 = vpop.f32.mrb[0].mxu0
      %503 = vdwg.mxu0
      %504 = vrot.lane.b32.xlu0 %v129, 80
      %v505 = vpop.permute.xlu0 %504
      %506 = vrot.lane.b32.xlu0 %v129, 16
      %v507 = vpop.permute.xlu0 %506
      %v509 = vsel %vm134, %v505, 0
      %v512 = vsel %vm134, %v507, 0
      %514 = vmatprep.subr.bf16.mxu0 0
      %515 = vmatpush1.bf16.xpose.msra.mxu0 %v512
      %516 = vmatprep.subr.bf16.mxu0 0
      %517 = vmatpush1.bf16.xpose.msra.mxu0 0
      %518 = vmatprep.subr.bf16.mxu0 0
      %519 = vmatpush1.bf16.xpose.msra.mxu0 0
      %520 = vmatprep.subr.bf16.mxu0 0
      %521 = vmatpush1.bf16.xpose.msra.mxu0 0
      %522 = vmatprep.subr.bf16.mxu0 0
      %523 = vmatpush1.bf16.xpose.msra.mxu0 0
      %524 = vmatprep.subr.bf16.mxu0 0
      %525 = vmatpush1.bf16.xpose.msra.mxu0 0
      %526 = vmatprep.subr.bf16.mxu0 0
      %527 = vmatpush1.bf16.xpose.msra.mxu0 0
      %528 = vmatprep.subr.bf16.mxu0 0
      %529 = vmatpush1.bf16.xpose.msra.mxu0 0
      %530 = vmatprep.subr.bf16.mxu0 0
      %531 = vmatpush1.bf16.xpose.msra.mxu0 0
      %532 = vmatprep.subr.bf16.mxu0 0
      %533 = vmatpush1.bf16.xpose.msra.mxu0 0
      %534 = vmatprep.subr.bf16.mxu0 0
      %535 = vmatpush1.bf16.xpose.msra.mxu0 0
      %536 = vmatprep.subr.bf16.mxu0 0
      %537 = vmatpush1.bf16.xpose.msra.mxu0 0
      %538 = vmatprep.subr.bf16.mxu0 0
      %539 = vmatpush1.bf16.xpose.msra.mxu0 0
      %540 = vmatprep.subr.bf16.mxu0 0
      %541 = vmatpush1.bf16.xpose.msra.mxu0 0
      %542 = vmatprep.subr.bf16.mxu0 0
      %543 = vmatpush1.bf16.xpose.msra.mxu0 0
      %544 = vmatprep.subr.bf16.mxu0 0
      %545 = vmatpush1.bf16.xpose.msra.mxu0 0
      %546 = vmatprep.mubr.bf16.mxu0 0
      %547 = vmatmul.mubr.bf16.gmra.mrb[0].mxu0 %v509
      %v548 = vpop.f32.mrb[0].mxu0
      %v549 = vadd.f32 0.0, %v548
      %v550 = vpop.f32.mrb[0].mxu0
      %v551 = vpop.f32.mrb[0].mxu0
      %v552 = vadd.f32 0.0, %v551
      %v553 = vpop.f32.mrb[0].mxu0
      %554 = vdwg.mxu0
      %v555 = vmul.f32 %v549, 0.25
      %v556 = vmul.f32 %v552, 0.25
      %v557 = vsel %vm127, %v555, -inf
      %v558 = vsel %vm128, %v556, -inf
      %v559 = vsel %vm134, %v557, -inf
      %560 = vmax.xlane.f32.xlu0 %v559
      %v561 = vpop.xlane.xlu0 %560
      %v562 = vsel %vm134, %v558, -inf
      %563 = vmax.xlane.f32.xlu0 %v562
      %v564 = vpop.xlane.xlu0 %563
      %v565 = vsub.f32 %v557, %v561
      %v566 = vsub.f32 %v558, %v564
      %v567 = vmul.f32 %v565, 1.442695
      %v568 = vpow.pop %v567
      %v569 = vmul.f32 %v566, 1.442695
      %v570 = vpow.pop %v569
      %v571 = vsel %vm134, %v568, 0.0
      %572 = vadd.xlane.f32.xlu0 %v571
      %v573 = vpop.xlane.xlu0 %572
      %v574 = vsel %vm134, %v570, 0.0
      %575 = vadd.xlane.f32.xlu0 %v574
      %v576 = vpop.xlane.xlu0 %575
      %v577 = vrcp.pop %v573
      %v578 = vrcp.pop %v576
      %v579 = vmul.f32 %v568, %v577
      %v580 = vmul.f32 %v570, %v578
      %v581 = vpack.c.bf16 %v580, %v579
      %582 = vrot.lane.b32.xlu0 %v130, 80
      %v583 = vpop.permute.xlu0 %582
      %v586 = vsel %vm134, %v581, 0
      %588 = vmatprep.subr.bf16.mxu0 0
      %589 = vmatpush1.bf16.msra.mxu0 %v583
      %590 = vmatprep.subr.bf16.mxu0 0
      %591 = vmatpush1.bf16.msra.mxu0 0
      %592 = vmatprep.subr.bf16.mxu0 0
      %593 = vmatpush1.bf16.msra.mxu0 0
      %594 = vmatprep.subr.bf16.mxu0 0
      %595 = vmatpush1.bf16.msra.mxu0 0
      %596 = vmatprep.subr.bf16.mxu0 0
      %597 = vmatpush1.bf16.msra.mxu0 0
      %598 = vmatprep.subr.bf16.mxu0 0
      %599 = vmatpush1.bf16.msra.mxu0 0
      %600 = vmatprep.subr.bf16.mxu0 0
      %601 = vmatpush1.bf16.msra.mxu0 0
      %602 = vmatprep.subr.bf16.mxu0 0
      %603 = vmatpush1.bf16.msra.mxu0 0
      %604 = vmatprep.subr.bf16.mxu0 0
      %605 = vmatpush1.bf16.msra.mxu0 0
      %606 = vmatprep.subr.bf16.mxu0 0
      %607 = vmatpush1.bf16.msra.mxu0 0
      %608 = vmatprep.subr.bf16.mxu0 0
      %609 = vmatpush1.bf16.msra.mxu0 0
      %610 = vmatprep.subr.bf16.mxu0 0
      %611 = vmatpush1.bf16.msra.mxu0 0
      %612 = vmatprep.subr.bf16.mxu0 0
      %613 = vmatpush1.bf16.msra.mxu0 0
      %614 = vmatprep.subr.bf16.mxu0 0
      %615 = vmatpush1.bf16.msra.mxu0 0
      %616 = vmatprep.subr.bf16.mxu0 0
      %617 = vmatpush1.bf16.msra.mxu0 0
      %618 = vmatprep.subr.bf16.mxu0 0
      %619 = vmatpush1.bf16.msra.mxu0 0
      %620 = vmatprep.mubr.bf16.mxu0 0
      %621 = vmatmul.mubr.bf16.gmra.mrb[0].mxu0 %v586
      %v622 = vpop.f32.mrb[0].mxu0
      %v623 = vadd.f32 0.0, %v622
      %v624 = vpop.f32.mrb[0].mxu0
      %v625 = vpop.f32.mrb[0].mxu0
      %v626 = vadd.f32 0.0, %v625
      %v627 = vpop.f32.mrb[0].mxu0
      %628 = vdwg.mxu0
      %631 = vrot.lane.b32.xlu0 %v373, 16
      %v632 = vpop.permute.xlu0 %631
      %633 = vrot.lane.b32.xlu0 %v376, 16
      %v634 = vpop.permute.xlu0 %633
      %639 = vrot.lane.b32.xlu0 %v498, 32
      %v640 = vpop.permute.xlu0 %639
      %641 = vrot.lane.b32.xlu0 %v501, 32
      %v642 = vpop.permute.xlu0 %641
      %647 = vrot.lane.b32.xlu0 %v623, 48
      %v648 = vpop.permute.xlu0 %647
      %649 = vrot.lane.b32.xlu0 %v626, 48
      %v650 = vpop.permute.xlu0 %649
      %v653 = vsel %vm134, %v247, %v632
      %v654 = vsel %vm134, %v250, %v634
      %vm655 = vcmask 261120
      %v656 = vsel %vm655, %v653, %v640
      %v657 = vsel %vm655, %v654, %v642
      %vm658 = vcmask 392192
      %v659 = vsel %vm658, %v656, %v648
      %v660 = vsel %vm658, %v657, %v650
      %vm661 = vcmask 523264
      %662 = vst.msk [vmem:[%s116] sm:$0xff] %vm661, %v659
      %663 = vst.msk [vmem:[%s116 + $0x8] sm:$0xff] %vm661, %v660
      %p664 = scmp.lt.s32.totalorder %s12, 1
      %s665 = scalar_select %p664, %s12, 1
      %s666 = smul.addr %s665, 2
      %s667 = smul.addr %s666, 8
      %s668 = scalar_lea.vmem %s1, %s667
      // Predicated region
      $region25: #{_lambda_.12} parent=23 // pred_check
        %p669 = pneg %p56
      $region26: #{_lambda_.12} parent=23 // pred_check_branch
        %671 = sbr.rel (%p669) target = $region28
      $region27: #{_lambda_.12} parent=23 // pred_region
        _
      $region28: #{_lambda_.12} parent=23 // pred_fallthru
        _
    $region24: #{_lambda_.12} parent=5 // pred_fallthru
      _
    %p672 = scmp.le.s32.totalorder 2, %s7
    // Predicated region
    $region29: #{_lambda_.12} parent=5 // pred_check
      %p673 = pneg %p672
    $region30: #{_lambda_.12} parent=5 // pred_check_branch
      %675 = sbr.rel (%p673) target = $region32
    $region31: #{_lambda_.12} parent=5 // pred_region
      %s676 = ssub.s32 %s7, 2
      // Predicated region
      $region33: #{_lambda_.12} parent=31 // pred_check
        %p677 = pneg %p62
      $region34: #{_lambda_.12} parent=31 // pred_check_branch
        %679 = sbr.rel (%p677) target = $region36
      $region35: #{_lambda_.12} parent=31 // pred_region
        %p680 = scmp.lt.s32.totalorder %s13, 1
        %s681 = scalar_select %p680, %s13, 1
        %s682 = smul.addr %s681, 2
        %s683 = smul.addr %s682, 8
        %s684 = scalar_lea.vmem %s1, %s683
      $region36: #{_lambda_.12} parent=31 // pred_fallthru
        _
    $region32: #{_lambda_.12} parent=5 // pred_fallthru
      _
  $region6: #{_lambda_.12} parent=0 // loop_footer
    %s11 = sadd.s32 1, %s7
  $region7: #{_lambda_.12} parent=0 // loop_footer_branch
    %6 = sbr.rel target = $region3
  $region8: #{_lambda_.12} parent=0 // loop_exit
    _

// kernel: _lambda_.15
$region0: #{_lambda_.15}
  #allocation0 [shape = 'u32[]', space=smem, size = 0x4, offset = 0x4, fixed_abs, tag = 'smem constant byte address 0x4 - core index']
  #allocation1 [shape = 'u32[144,128]{1,0:T(1,128)}', space=vmem, size = 0x12000, scoped, tag = 'internal scratch']
  #allocation2 [shape = 'f32[32,64]{1,0:T(8,128)}', space=vmem, size = 0x4000, scoped, tag = 'scratch operand']
  %s0 = inlined_call_operand.vmem [shape: f32[32,256], index: 0, kind: input, shape index: {}]
  %s1 = inlined_call_operand.vmem [shape: f32[256,64], index: 1, kind: input, shape index: {}]
  %s2 = inlined_call_operand.vmem [shape: f32[1,64], index: 2, kind: input, shape index: {}]
  %s3 = inlined_call_operand.vmem [shape: f32[32,64], index: 3, kind: input, shape index: {}]
  %s4 = inlined_call_operand.vmem [shape: f32[32,64], index: 4, kind: output, shape index: {}]
  %s5 = sld [smem:[#allocation0]]
  $region34: #{_lambda_.15} parent=0
    _
  %s7 = ssub.s32 1, %s5
  %s8 = scalar_select 0, %s7, %s5
  // Predicated region
  $region2: #{_lambda_.15} parent=0 // pred_check
    _
  $region3: #{_lambda_.15} parent=0 // pred_check_branch
    %10 = sbr.rel (0) target = $region5
  $region4: #{_lambda_.15} parent=0 // pred_region
    _
  $region5: #{_lambda_.15} parent=0 // pred_fallthru
    _
  // Predicated region
  $region6: #{_lambda_.15} parent=0 // pred_check
    _
  $region7: #{_lambda_.15} parent=0 // pred_check_branch
    %12 = sbr.rel (0) target = $region9
  $region8: #{_lambda_.15} parent=0 // pred_region
    _
  $region9: #{_lambda_.15} parent=0 // pred_fallthru
    _
  // Predicated region
  $region10: #{_lambda_.15} parent=0 // pred_check
    _
  $region11: #{_lambda_.15} parent=0 // pred_check_branch
    %14 = sbr.rel (0) target = $region13
  $region12: #{_lambda_.15} parent=0 // pred_region
    _
  $region13: #{_lambda_.15} parent=0 // pred_fallthru
    _
  // Predicated region
  $region14: #{_lambda_.15} parent=0 // pred_check
    _
  $region15: #{_lambda_.15} parent=0 // pred_check_branch
    %16 = sbr.rel (0) target = $region17
  $region16: #{_lambda_.15} parent=0 // pred_region
    _
  $region17: #{_lambda_.15} parent=0 // pred_fallthru
    _
  %p18 = scmp.eq.s32.totalorder 0, 0
  // Predicated region
  $region18: #{_lambda_.15} parent=0 // pred_check
    %p19 = pneg %p18
  $region19: #{_lambda_.15} parent=0 // pred_check_branch
    %21 = sbr.rel (%p19) target = $region21
  $region20: #{_lambda_.15} parent=0 // pred_region
    %vm22 = vcmask 523264
    %23 = vst.msk [vmem:[#allocation2] sm:$0xff] %vm22, 0.0
    %24 = vst.msk [vmem:[#allocation2 + $0x8] sm:$0xff] %vm22, 0.0
    %25 = vst.msk [vmem:[#allocation2 + $0x10] sm:$0xff] %vm22, 0.0
    %26 = vst.msk [vmem:[#allocation2 + $0x18] sm:$0xff] %vm22, 0.0
  $region21: #{_lambda_.15} parent=0 // pred_fallthru
    _
  %v27 = vld [vmem:[#allocation2] sm:$0xff]
  %v28 = vld [vmem:[#allocation2 + $0x8] sm:$0xff]
  %v29 = vld [vmem:[#allocation2 + $0x10] sm:$0xff]
  %v30 = vld [vmem:[#allocation2 + $0x18] sm:$0xff]
  %v31 = vld [vmem:[%s0] sm:$0xff]
  %v32 = vld [vmem:[%s0 + $0x8] sm:$0xff]
  %v33 = vld [vmem:[%s0 + $0x10] sm:$0xff]
  %v34 = vld [vmem:[%s0 + $0x18] sm:$0xff]
  %v35 = vld [vmem:[%s0 + $0x20] sm:$0xff]
  %v36 = vld [vmem:[%s0 + $0x28] sm:$0xff]
  %v37 = vld [vmem:[%s0 + $0x30] sm:$0xff]
  %v38 = vld [vmem:[%s0 + $0x38] sm:$0xff]
  %v39 = vpack.c.bf16 %v33, %v31
  %v40 = vpack.c.bf16 %v34, %v32
  %v41 = vpack.c.bf16 %v37, %v35
  %v42 = vpack.c.bf16 %v38, %v36
  %v43 = vld [vmem:[%s1] sm:$0xff]
  %v44 = vld [vmem:[%s1 + $0x8] sm:$0xff]
  %v45 = vld [vmem:[%s1 + $0x10] sm:$0xff]
  %v46 = vld [vmem:[%s1 + $0x18] sm:$0xff]
  %v47 = vld [vmem:[%s1 + $0x20] sm:$0xff]
  %v48 = vld [vmem:[%s1 + $0x28] sm:$0xff]
  %v49 = vld [vmem:[%s1 + $0x30] sm:$0xff]
  %v50 = vld [vmem:[%s1 + $0x38] sm:$0xff]
  %v51 = vld [vmem:[%s1 + $0x40] sm:$0xff]
  %v52 = vld [vmem:[%s1 + $0x48] sm:$0xff]
  %v53 = vld [vmem:[%s1 + $0x50] sm:$0xff]
  %v54 = vld [vmem:[%s1 + $0x58] sm:$0xff]
  %v55 = vld [vmem:[%s1 + $0x60] sm:$0xff]
  %v56 = vld [vmem:[%s1 + $0x68] sm:$0xff]
  %v57 = vld [vmem:[%s1 + $0x70] sm:$0xff]
  %v58 = vld [vmem:[%s1 + $0x78] sm:$0xff]
  %v59 = vld [vmem:[%s1 + $0x80] sm:$0xff]
  %v60 = vld [vmem:[%s1 + $0x88] sm:$0xff]
  %v61 = vld [vmem:[%s1 + $0x90] sm:$0xff]
  %v62 = vld [vmem:[%s1 + $0x98] sm:$0xff]
  %v63 = vld [vmem:[%s1 + $0xa0] sm:$0xff]
  %v64 = vld [vmem:[%s1 + $0xa8] sm:$0xff]
  %v65 = vld [vmem:[%s1 + $0xb0] sm:$0xff]
  %v66 = vld [vmem:[%s1 + $0xb8] sm:$0xff]
  %v67 = vld [vmem:[%s1 + $0xc0] sm:$0xff]
  %v68 = vld [vmem:[%s1 + $0xc8] sm:$0xff]
  %v69 = vld [vmem:[%s1 + $0xd0] sm:$0xff]
  %v70 = vld [vmem:[%s1 + $0xd8] sm:$0xff]
  %v71 = vld [vmem:[%s1 + $0xe0] sm:$0xff]
  %v72 = vld [vmem:[%s1 + $0xe8] sm:$0xff]
  %v73 = vld [vmem:[%s1 + $0xf0] sm:$0xff]
  %v74 = vld [vmem:[%s1 + $0xf8] sm:$0xff]
  %v75 = vpack.c.bf16 %v44, %v43
  %v76 = vpack.c.bf16 %v46, %v45
  %v77 = vpack.c.bf16 %v48, %v47
  %v78 = vpack.c.bf16 %v50, %v49
  %v79 = vpack.c.bf16 %v52, %v51
  %v80 = vpack.c.bf16 %v54, %v53
  %v81 = vpack.c.bf16 %v56, %v55
  %v82 = vpack.c.bf16 %v58, %v57
  %v83 = vpack.c.bf16 %v60, %v59
  %v84 = vpack.c.bf16 %v62, %v61
  %v85 = vpack.c.bf16 %v64, %v63
  %v86 = vpack.c.bf16 %v66, %v65
  %v87 = vpack.c.bf16 %v68, %v67
  %v88 = vpack.c.bf16 %v70, %v69
  %v89 = vpack.c.bf16 %v72, %v71
  %v90 = vpack.c.bf16 %v74, %v73
  %91 = vmatprep.subr.bf16.mxu0 0
  %92 = vmatpush1.bf16.msra.mxu0 %v75
  %93 = vmatprep.subr.bf16.mxu0 0
  %94 = vmatpush1.bf16.msra.mxu0 %v76
  %95 = vmatprep.subr.bf16.mxu0 0
  %96 = vmatpush1.bf16.msra.mxu0 %v77
  %97 = vmatprep.subr.bf16.mxu0 0
  %98 = vmatpush1.bf16.msra.mxu0 %v78
  %99 = vmatprep.subr.bf16.mxu0 0
  %100 = vmatpush1.bf16.msra.mxu0 %v79
  %101 = vmatprep.subr.bf16.mxu0 0
  %102 = vmatpush1.bf16.msra.mxu0 %v80
  %103 = vmatprep.subr.bf16.mxu0 0
  %104 = vmatpush1.bf16.msra.mxu0 %v81
  %105 = vmatprep.subr.bf16.mxu0 0
  %106 = vmatpush1.bf16.msra.mxu0 %v82
  %107 = vmatprep.subr.bf16.mxu0 0
  %108 = vmatpush1.bf16.msra.mxu0 %v83
  %109 = vmatprep.subr.bf16.mxu0 0
  %110 = vmatpush1.bf16.msra.mxu0 %v84
  %111 = vmatprep.subr.bf16.mxu0 0
  %112 = vmatpush1.bf16.msra.mxu0 %v85
  %113 = vmatprep.subr.bf16.mxu0 0
  %114 = vmatpush1.bf16.msra.mxu0 %v86
  %115 = vmatprep.subr.bf16.mxu0 0
  %116 = vmatpush1.bf16.msra.mxu0 %v87
  %117 = vmatprep.subr.bf16.mxu0 0
  %118 = vmatpush1.bf16.msra.mxu0 %v88
  %119 = vmatprep.subr.bf16.mxu0 0
  %120 = vmatpush1.bf16.msra.mxu0 %v89
  %121 = vmatprep.subr.bf16.mxu0 0
  %122 = vmatpush1.bf16.msra.mxu0 %v90
  %123 = vmatprep.mubr.bf16.mxu0 %v40
  %124 = vmatmul.mubr.bf16.gmra.mrb[0].mxu0 %v39
  %v125 = vpop.f32.mrb[0].mxu0
  %v126 = vadd.f32 0.0, %v125
  %v127 = vpop.f32.mrb[0].mxu0
  %v128 = vpop.f32.mrb[0].mxu0
  %v129 = vadd.f32 0.0, %v128
  %v130 = vpop.f32.mrb[0].mxu0
  %131 = vmatprep.mubr.bf16.mxu0 %v42
  %132 = vmatmul.mubr.bf16.gmra.mrb[0].mxu0 %v41
  %v133 = vpop.f32.mrb[0].mxu0
  %v134 = vadd.f32 0.0, %v133
  %v135 = vpop.f32.mrb[0].mxu0
  %v136 = vpop.f32.mrb[0].mxu0
  %v137 = vadd.f32 0.0, %v136
  %v138 = vpop.f32.mrb[0].mxu0
  %139 = vdwg.mxu0
  %v140 = vadd.f32 %v27, %v126
  %v141 = vadd.f32 %v28, %v129
  %v142 = vadd.f32 %v29, %v134
  %v143 = vadd.f32 %v30, %v137
  %vm144 = vcmask 523264
  %145 = vst.msk [vmem:[#allocation2] sm:$0xff] %vm144, %v140
  %146 = vst.msk [vmem:[#allocation2 + $0x8] sm:$0xff] %vm144, %v141
  %147 = vst.msk [vmem:[#allocation2 + $0x10] sm:$0xff] %vm144, %v142
  %148 = vst.msk [vmem:[#allocation2 + $0x18] sm:$0xff] %vm144, %v143
  // Predicated region
  $region22: #{_lambda_.15} parent=0 // pred_check
    %p149 = pneg %p18
  $region23: #{_lambda_.15} parent=0 // pred_check_branch
    %151 = sbr.rel (%p149) target = $region25
  $region24: #{_lambda_.15} parent=0 // pred_region
    %v152 = vld [vmem:[#allocation2] sm:$0xff]
    %v153 = vld [vmem:[#allocation2 + $0x8] sm:$0xff]
    %v154 = vld [vmem:[#allocation2 + $0x10] sm:$0xff]
    %v155 = vld [vmem:[#allocation2 + $0x18] sm:$0xff]
    %v156 = vld [vmem:[%s2] sm:$0x1]
    %v158 = vlaneseq
    %v159 = vshrl.u32 %v158, 7
    %v160 = vsub.s32 0, %v159
    %v161 = vrot.slane %v156, %v160
    %v163 = vadd.f32 %v152, %v161
    %v164 = vadd.f32 %v153, %v161
    %v165 = vadd.f32 %v154, %v161
    %v166 = vadd.f32 %v155, %v161
    %v167 = vld [vmem:[%s3] sm:$0xff]
    %v168 = vld [vmem:[%s3 + $0x8] sm:$0xff]
    %v169 = vld [vmem:[%s3 + $0x10] sm:$0xff]
    %v170 = vld [vmem:[%s3 + $0x18] sm:$0xff]
    %v171 = vadd.f32 %v163, %v167
    %v172 = vadd.f32 %v164, %v168
    %v173 = vadd.f32 %v165, %v169
    %v174 = vadd.f32 %v166, %v170
    %175 = vst.msk [vmem:[%s4] sm:$0xff] %vm144, %v171
    %176 = vst.msk [vmem:[%s4 + $0x8] sm:$0xff] %vm144, %v172
    %177 = vst.msk [vmem:[%s4 + $0x10] sm:$0xff] %vm144, %v173
    %178 = vst.msk [vmem:[%s4 + $0x18] sm:$0xff] %vm144, %v174
  $region25: #{_lambda_.15} parent=0 // pred_fallthru
    _
  // Predicated region
  $region26: #{_lambda_.15} parent=0 // pred_check
    _
  $region27: #{_lambda_.15} parent=0 // pred_check_branch
    %180 = sbr.rel (0) target = $region29
  $region28: #{_lambda_.15} parent=0 // pred_region
    _
  $region29: #{_lambda_.15} parent=0 // pred_fallthru
    _
  // Predicated region
  $region30: #{_lambda_.15} parent=0 // pred_check
    _
  $region31: #{_lambda_.15} parent=0 // pred_check_branch
    %182 = sbr.rel (0) target = $region33
  $region32: #{_lambda_.15} parent=0 // pred_region
    _
  $region33: #{_lambda_.15} parent=0 // pred_fallthru
    _

// kernel: _lambda_.21
$region0: #{_lambda_.21}
  #allocation0 [shape = 'u32[]', space=smem, size = 0x4, offset = 0x4, fixed_abs, tag = 'smem constant byte address 0x4 - core index']
  #allocation1 [shape = 'u32[144,128]{1,0:T(1,128)}', space=vmem, size = 0x12000, scoped, tag = 'internal scratch']
  %s0 = inlined_call_operand.vmem [shape: f32[32,64], index: 0, kind: input, shape index: {}]
  %s1 = inlined_call_operand.vmem [shape: f32[1,64], index: 1, kind: input, shape index: {}]
  %s2 = inlined_call_operand.vmem [shape: f32[1,64], index: 2, kind: input, shape index: {}]
  %s3 = inlined_call_operand.vmem [shape: f32[64,128], index: 3, kind: input, shape index: {}]
  %s4 = inlined_call_operand.vmem [shape: f32[1,128], index: 4, kind: input, shape index: {}]
  %s5 = inlined_call_operand.hbm [shape: f32[32,128], index: 5, kind: output, shape index: {}]
  %s6 = sld [smem:[#allocation0]]
  $region30: #{_lambda_.21} parent=0
    _
  %s8 = ssub.s32 1, %s6
  %s9 = scalar_select 0, %s8, %s6
  $region1: #{_lambda_.21} parent=0
    #allocation2 [shape = 'u8[16384]{0}', space=vmem, size = 0x4000, scoped, tag = 'output window, operand 0, single buffered']
    #allocation3 [shape = 's32[1]{0}', space=sflag, size = 0x4, scoped, tag = 'scoped memory for _lambda_.21']
    %10 = vsyncpa [#allocation3], 0
    // Predicated region
    $region2: #{_lambda_.21} parent=1 // pred_check
      _
    $region3: #{_lambda_.21} parent=1 // pred_check_branch
      %12 = sbr.rel (0) target = $region5
    $region4: #{_lambda_.21} parent=1 // pred_region
      _
    $region5: #{_lambda_.21} parent=1 // pred_fallthru
      _
    // Predicated region
    $region6: #{_lambda_.21} parent=1 // pred_check
      _
    $region7: #{_lambda_.21} parent=1 // pred_check_branch
      %14 = sbr.rel (0) target = $region9
    $region8: #{_lambda_.21} parent=1 // pred_region
      _
    $region9: #{_lambda_.21} parent=1 // pred_fallthru
      _
    // Predicated region
    $region10: #{_lambda_.21} parent=1 // pred_check
      _
    $region11: #{_lambda_.21} parent=1 // pred_check_branch
      %16 = sbr.rel (0) target = $region13
    $region12: #{_lambda_.21} parent=1 // pred_region
      _
    $region13: #{_lambda_.21} parent=1 // pred_fallthru
      _
    // Predicated region
    $region14: #{_lambda_.21} parent=1 // pred_check
      _
    $region15: #{_lambda_.21} parent=1 // pred_check_branch
      %18 = sbr.rel (0) target = $region17
    $region16: #{_lambda_.21} parent=1 // pred_region
      _
    $region17: #{_lambda_.21} parent=1 // pred_fallthru
      _
    // Predicated region
    $region18: #{_lambda_.21} parent=1 // pred_check
      _
    $region19: #{_lambda_.21} parent=1 // pred_check_branch
      %20 = sbr.rel (0) target = $region21
    $region20: #{_lambda_.21} parent=1 // pred_region
      _
    $region21: #{_lambda_.21} parent=1 // pred_fallthru
      _
    %v22 = vld [vmem:[%s0] sm:$0xff]
    %v23 = vld [vmem:[%s0 + $0x8] sm:$0xff]
    %v24 = vld [vmem:[%s0 + $0x10] sm:$0xff]
    %v25 = vld [vmem:[%s0 + $0x18] sm:$0xff]
    %vm26 = vcmask 523264
    %v27 = vsel %vm26, %v22, 0.0
    %28 = vadd.xlane.f32.xlu0 %v27
    %v29 = vpop.xlane.xlu0 %28
    %v30 = vsel %vm26, %v23, 0.0
    %31 = vadd.xlane.f32.xlu0 %v30
    %v32 = vpop.xlane.xlu0 %31
    %v33 = vsel %vm26, %v24, 0.0
    %34 = vadd.xlane.f32.xlu0 %v33
    %v35 = vpop.xlane.xlu0 %34
    %v36 = vsel %vm26, %v25, 0.0
    %37 = vadd.xlane.f32.xlu0 %v36
    %v38 = vpop.xlane.xlu0 %37
    %v39 = vrcp.pop 64.0
    %v40 = vmul.f32 %v29, %v39
    %v41 = vmul.f32 %v32, %v39
    %v42 = vmul.f32 %v35, %v39
    %v43 = vmul.f32 %v38, %v39
    %v44 = vsub.f32 %v22, %v40
    %v45 = vsub.f32 %v23, %v41
    %v46 = vsub.f32 %v24, %v42
    %v47 = vsub.f32 %v25, %v43
    %v48 = vmul.f32 %v44, %v44
    %v49 = vmul.f32 %v45, %v45
    %v50 = vmul.f32 %v46, %v46
    %v51 = vmul.f32 %v47, %v47
    %v52 = vsel %vm26, %v48, 0.0
    %53 = vadd.xlane.f32.xlu0 %v52
    %v54 = vpop.xlane.xlu0 %53
    %v55 = vsel %vm26, %v49, 0.0
    %56 = vadd.xlane.f32.xlu0 %v55
    %v57 = vpop.xlane.xlu0 %56
    %v58 = vsel %vm26, %v50, 0.0
    %59 = vadd.xlane.f32.xlu0 %v58
    %v60 = vpop.xlane.xlu0 %59
    %v61 = vsel %vm26, %v51, 0.0
    %62 = vadd.xlane.f32.xlu0 %v61
    %v63 = vpop.xlane.xlu0 %62
    %v64 = vmul.f32 %v54, %v39
    %v65 = vmul.f32 %v57, %v39
    %v66 = vmul.f32 %v60, %v39
    %v67 = vmul.f32 %v63, %v39
    %v68 = vadd.f32 %v64, 1e-05
    %v69 = vadd.f32 %v65, 1e-05
    %v70 = vadd.f32 %v66, 1e-05
    %v71 = vadd.f32 %v67, 1e-05
    %v72 = vrsqrt.pop %v68
    %v73 = vrsqrt.pop %v69
    %v74 = vrsqrt.pop %v70
    %v75 = vrsqrt.pop %v71
    %v76 = vmul.f32 %v44, %v72
    %v77 = vmul.f32 %v45, %v73
    %v78 = vmul.f32 %v46, %v74
    %v79 = vmul.f32 %v47, %v75
    %v80 = vld [vmem:[%s1] sm:$0x1]
    %v82 = vlaneseq
    %v83 = vshrl.u32 %v82, 7
    %v84 = vsub.s32 0, %v83
    %v85 = vrot.slane %v80, %v84
    %v87 = vmul.f32 %v76, %v85
    %v88 = vmul.f32 %v77, %v85
    %v89 = vmul.f32 %v78, %v85
    %v90 = vmul.f32 %v79, %v85
    %v91 = vld [vmem:[%s2] sm:$0x1]
    %v93 = vlaneseq
    %v94 = vshrl.u32 %v93, 7
    %v95 = vsub.s32 0, %v94
    %v96 = vrot.slane %v91, %v95
    %v98 = vadd.f32 %v87, %v96
    %v99 = vadd.f32 %v88, %v96
    %v100 = vadd.f32 %v89, %v96
    %v101 = vadd.f32 %v90, %v96
    %v102 = vpack.c.bf16 %v99, %v98
    %v103 = vpack.c.bf16 %v101, %v100
    %v104 = vld [vmem:[%s3] sm:$0xff]
    %v105 = vld [vmem:[%s3 + $0x8] sm:$0xff]
    %v106 = vld [vmem:[%s3 + $0x10] sm:$0xff]
    %v107 = vld [vmem:[%s3 + $0x18] sm:$0xff]
    %v108 = vld [vmem:[%s3 + $0x20] sm:$0xff]
    %v109 = vld [vmem:[%s3 + $0x28] sm:$0xff]
    %v110 = vld [vmem:[%s3 + $0x30] sm:$0xff]
    %v111 = vld [vmem:[%s3 + $0x38] sm:$0xff]
    %v112 = vpack.c.bf16 %v105, %v104
    %v113 = vpack.c.bf16 %v107, %v106
    %v114 = vpack.c.bf16 %v109, %v108
    %v115 = vpack.c.bf16 %v111, %v110
    %v116 = vld [vmem:[%s4] sm:$0x1]
    %v118 = vlaneseq
    %v119 = vshrl.u32 %v118, 7
    %v120 = vsub.s32 0, %v119
    %v121 = vrot.slane %v116, %v120
    %v124 = vsel %vm26, %v102, 0
    %v127 = vsel %vm26, %v103, 0
    %129 = vmatprep.subr.bf16.mxu0 0
    %130 = vmatpush1.bf16.msra.mxu0 %v112
    %131 = vmatprep.subr.bf16.mxu0 0
    %132 = vmatpush1.bf16.msra.mxu0 %v113
    %133 = vmatprep.subr.bf16.mxu0 0
    %134 = vmatpush1.bf16.msra.mxu0 %v114
    %135 = vmatprep.subr.bf16.mxu0 0
    %136 = vmatpush1.bf16.msra.mxu0 %v115
    %137 = vmatprep.subr.bf16.mxu0 0
    %138 = vmatpush1.bf16.msra.mxu0 0
    %139 = vmatprep.subr.bf16.mxu0 0
    %140 = vmatpush1.bf16.msra.mxu0 0
    %141 = vmatprep.subr.bf16.mxu0 0
    %142 = vmatpush1.bf16.msra.mxu0 0
    %143 = vmatprep.subr.bf16.mxu0 0
    %144 = vmatpush1.bf16.msra.mxu0 0
    %145 = vmatprep.subr.bf16.mxu0 0
    %146 = vmatpush1.bf16.msra.mxu0 0
    %147 = vmatprep.subr.bf16.mxu0 0
    %148 = vmatpush1.bf16.msra.mxu0 0
    %149 = vmatprep.subr.bf16.mxu0 0
    %150 = vmatpush1.bf16.msra.mxu0 0
    %151 = vmatprep.subr.bf16.mxu0 0
    %152 = vmatpush1.bf16.msra.mxu0 0
    %153 = vmatprep.subr.bf16.mxu0 0
    %154 = vmatpush1.bf16.msra.mxu0 0
    %155 = vmatprep.subr.bf16.mxu0 0
    %156 = vmatpush1.bf16.msra.mxu0 0
    %157 = vmatprep.subr.bf16.mxu0 0
    %158 = vmatpush1.bf16.msra.mxu0 0
    %159 = vmatprep.subr.bf16.mxu0 0
    %160 = vmatpush1.bf16.msra.mxu0 0
    %161 = vmatprep.mubr.bf16.mxu0 0
    %162 = vmatmul.mubr.bf16.gmra.mrb[0].mxu0 %v124
    %v163 = vpop.f32.mrb[0].mxu0
    %v164 = vadd.f32 %v121, %v163
    %v165 = vpop.f32.mrb[0].mxu0
    %v166 = vpop.f32.mrb[0].mxu0
    %v167 = vadd.f32 %v121, %v166
    %v168 = vpop.f32.mrb[0].mxu0
    %169 = vmatprep.mubr.bf16.mxu0 0
    %170 = vmatmul.mubr.bf16.gmra.mrb[0].mxu0 %v127
    %v171 = vpop.f32.mrb[0].mxu0
    %v172 = vadd.f32 %v121, %v171
    %v173 = vpop.f32.mrb[0].mxu0
    %v174 = vpop.f32.mrb[0].mxu0
    %v175 = vadd.f32 %v121, %v174
    %v176 = vpop.f32.mrb[0].mxu0
    %177 = vdwg.mxu0
    %178 = vst [vmem:[#allocation2] sm:$0xff] %v164
    %179 = vst [vmem:[#allocation2 + $0x8] sm:$0xff] %v167
    %180 = vst [vmem:[#allocation2 + $0x10] sm:$0xff] %v172
    %181 = vst [vmem:[#allocation2 + $0x18] sm:$0xff] %v175
    // Predicated region
    $region22: #{_lambda_.21} parent=1 // pred_check
      _
    $region23: #{_lambda_.21} parent=1 // pred_check_branch
      %183 = sbr.rel (0) target = $region25
    $region24: #{_lambda_.21} parent=1 // pred_region
      %s185 = ssub.s32 512, 512
      %186 = vsyncadd [#allocation3], %s185
      %s187 = sshll.u32 [#allocation2], 4
      %s188 = int_to_ptr.vmem [resolvable:$true] %s187
      %193 = dma.vmem_to_hbm [thread:$0]  %s188, 512, %s5, [#allocation3], 128, 128, 8
    $region25: #{_lambda_.21} parent=1 // pred_fallthru
      _
    // Predicated region
    $region26: #{_lambda_.21} parent=1 // pred_check
      _
    $region27: #{_lambda_.21} parent=1 // pred_check_branch
      %195 = sbr.rel (0) target = $region29
    $region28: #{_lambda_.21} parent=1 // pred_region
      %196 = dma.done [#allocation3], 512
    $region29: #{_lambda_.21} parent=1 // pred_fallthru
      _
    %197 = vsyncpa [#allocation3], 1

</llo_original>
